<compile_context>
chip_gen: v5e
topology: v5e:2x2
jax: 0.10.0
libtpu: 0.0.40
codegen_flags: <defaults>
</compile_context>

<pallas_src>
from functools import partial

import jax
import jax.numpy as jnp
from jax.experimental import pallas as pl
from jax.experimental.pallas import tpu as pltpu

HEAD_DIM = 64   # hard-coded in the PyTorch module (self.head_dim = 64)
LANES = 128


def _attention_kernel(x_ref, wqkv_ref, wproj_ref, bproj_ref, o_ref, *,
                      num_heads, scale):
    Bt, N, Cp = x_ref.shape
    H, D = num_heads, HEAD_DIM
    HD = H * D
    M = Bt * N

    # ---- fused QKV projection: one (M, Cp) @ (Cp, 3*HD) MXU matmul ----------
    x2 = x_ref[...].reshape(M, Cp).astype(jnp.bfloat16)      # leading-dim merge
    wqkv = wqkv_ref[...].astype(jnp.bfloat16)
    qkv = jnp.dot(x2, wqkv, preferred_element_type=jnp.float32)   # (M, 3*HD) f32

    # q | k | v column blocks are HD-wide and 128-aligned (torch order).
    # token_index is all-True in the module, so the k/v gather is the identity.
    q_all = (qkv[:, 0:HD] * scale).astype(jnp.bfloat16)      # scale q, not NxN scores
    k_all = qkv[:, HD:2 * HD].astype(jnp.bfloat16)
    v_all = qkv[:, 2 * HD:3 * HD].astype(jnp.bfloat16)

    # ---- one relayout per operand: head-as-lane-offset -> head-as-plane -----
    # (M, HD) -> (H*Bt, N, D), done once in bf16, instead of 64-lane slices
    # interleaved with per-head matmuls.
    def heads_to_planes(t):
        t3 = t.reshape(Bt, N, HD)                            # leading split (free)
        return jnp.stack([t3[:, :, h * D:(h + 1) * D] for h in range(H)],
                         axis=0).reshape(H * Bt, N, D)

    q3 = heads_to_planes(q_all)
    k3 = heads_to_planes(k_all)
    v3 = heads_to_planes(v_all)

    # ---- attention: a single batched MXU stream over z = (head, batch) ------
    # Both operands contract on their minor dim (no materialized k^T).
    s = jnp.einsum('znd,zmd->znm', q3, k3,
                   preferred_element_type=jnp.float32)        # (H*Bt, N, N) f32
    m = jnp.max(s, axis=-1, keepdims=True)
    p = jnp.exp(s - m)
    l = jnp.sum(p, axis=-1, keepdims=True)

    if N > D:
        # Deferred normalization: scale the (z, N, D) output instead of the
        # (z, N, N) probabilities (factor N/64 less VPU work at real ViT N).
        o3 = jnp.einsum('znm,zmd->znd', p.astype(jnp.bfloat16), v3,
                        preferred_element_type=jnp.float32)
        o3 = o3 * pl.reciprocal(l, approx=True)               # EUP slot
    else:
        p = p * pl.reciprocal(l, approx=True)
        o3 = jnp.einsum('znm,zmd->znd', p.astype(jnp.bfloat16), v3,
                        preferred_element_type=jnp.float32)

    # ---- heads back to lanes, then ONE (M, HD) @ (HD, Cp) proj matmul -------
    o4 = o3.astype(jnp.bfloat16).reshape(H, Bt, N, D)
    o_all = jnp.concatenate([o4[h] for h in range(H)], axis=-1).reshape(M, HD)
    y = jnp.dot(o_all, wproj_ref[...].astype(jnp.bfloat16),
                preferred_element_type=jnp.float32) + bproj_ref[...]

    # Lane-dense store: Cp is a multiple of 128 (padded in the wrapper).
    o_ref[...] = y.reshape(Bt, N, Cp).astype(o_ref.dtype)


def attention_forward(x, w_qkv, w_proj, b_proj, *, num_heads, block_b=None):
    B, N, C = x.shape
    hd = num_heads * HEAD_DIM
    assert w_qkv.shape == (C, 3 * hd)
    assert w_proj.shape == (hd, C)
    assert b_proj.shape == (C,)
    scale = HEAD_DIM ** (-0.5)

    # Zero-pad the embedding width to a lane-dense multiple of 128.  Real ViT
    # widths (C % 128 == 0) skip this entirely; the toy C=32 config gains
    # unmasked matmuls and unmasked output stores.
    Cp = ((C + LANES - 1) // LANES) * LANES
    if Cp != C:
        x = jnp.pad(x, ((0, 0), (0, 0), (0, Cp - C)))
        w_qkv = jnp.pad(w_qkv, ((0, Cp - C), (0, 0)))
        w_proj = jnp.pad(w_proj, ((0, 0), (0, Cp - C)))
        b_proj = jnp.pad(b_proj, ((0, Cp - C),))
    b2 = b_proj.reshape(1, Cp).astype(jnp.float32)

    if block_b is None:
        # ~256 rows/step fills the 256-deep MXU on v6e/v7x (v5e's 128-deep MXU
        # is already full), but keep >= 2 grid steps whenever B >= 2 so both
        # v7x TensorCores get work and DMA/compute can overlap.
        block_b = max(1, min(B, 256 // max(N, 1)))
        if B >= 2:
            block_b = min(block_b, B // 2)
        while B % block_b:
            block_b -= 1
    grid = (B // block_b,)
    # NOTE: block_b*N should be a multiple of 8 sublanes so the in-kernel
    # (Bt,N,Cp)->(Bt*N,Cp) reshape is a pure leading-dim merge (true here).

    kernel = partial(_attention_kernel, num_heads=num_heads, scale=scale)

    def run(single_buffer_weights):
        # Grid-invariant weights/bias: index_map is constant, so double
        # buffering them is pure VMEM waste (matters at real ViT widths on
        # v7x's 64 MiB VMEM).
        wmode = ({"pipeline_mode": pl.Buffered(1)}
                 if single_buffer_weights else {})
        return pl.pallas_call(
            kernel,
            out_shape=jax.ShapeDtypeStruct((B, N, Cp), x.dtype),
            grid=grid,
            in_specs=[
                pl.BlockSpec((block_b, N, Cp), lambda b: (b, 0, 0)),   # activations
                pl.BlockSpec((Cp, 3 * hd), lambda b: (0, 0), **wmode), # qkv weight
                pl.BlockSpec((hd, Cp), lambda b: (0, 0), **wmode),     # proj weight
                pl.BlockSpec((1, Cp), lambda b: (0, 0), **wmode),      # proj bias
            ],
            out_specs=pl.BlockSpec((block_b, N, Cp), lambda b: (b, 0, 0)),
            compiler_params=pltpu.CompilerParams(
                dimension_semantics=("parallel",),
                vmem_limit_bytes=64 * 1024 * 1024),
        )(x, w_qkv, w_proj, b2)

    try:
        out = run(True)
    except Exception:
        # pipeline_mode=pl.Buffered(1) unsupported on this jax version/backend:
        # fall back to default double-buffered weights.
        out = run(False)

    return out[:, :, :C] if Cp != C else out


def attention_reference(x, w_qkv, w_proj, b_proj, *, num_heads):
    """Pure-JAX f32 reference mirroring the PyTorch forward exactly."""
    B, N, C = x.shape
    hd = num_heads * HEAD_DIM
    qkv = x @ w_qkv                                            # (B, N, 3*H*D)
    qkv = qkv.reshape(B, N, 3, num_heads, HEAD_DIM).transpose(2, 0, 3, 1, 4)
    q, k, v = qkv[0], qkv[1], qkv[2]                           # (B, H, N, D)
    attn = jnp.einsum('bhnd,bhmd->bhnm', q, k) * (HEAD_DIM ** -0.5)
    attn = jax.nn.softmax(attn, axis=-1)
    o = jnp.einsum('bhnm,bhmd->bhnd', attn, v)
    o = o.transpose(0, 2, 1, 3).reshape(B, N, hd)
    return o @ w_proj + b_proj


if __name__ == "__main__":
    # Small config consistent with the module:
    #   dim=32, num_patches=15, num_tokens=1 -> N = 16, num_heads=2, head_dim=64
    B, N, C = 2, 16, 32
    num_heads = 2
    hd = num_heads * HEAD_DIM

    key = jax.random.PRNGKey(0)
    kx, kqkv, kproj, kb = jax.random.split(key, 4)
    x = jax.random.normal(kx, (B, N, C), dtype=jnp.float32)
    w_qkv = jax.random.normal(kqkv, (C, 3 * hd), dtype=jnp.float32) * 0.02
    w_proj = jax.random.normal(kproj, (hd, C), dtype=jnp.float32) * 0.02
    b_proj = jax.random.normal(kb, (C,), dtype=jnp.float32) * 0.02

    out = attention_forward(x, w_qkv, w_proj, b_proj, num_heads=num_heads)
    out = jax.block_until_ready(out)

    ref = attention_reference(x, w_qkv, w_proj, b_proj, num_heads=num_heads)
    assert out.shape == (B, N, C), out.shape
    # bf16 MXU operands + approx reciprocal -> looser tolerance than pure f32.
    assert jnp.allclose(out, ref, atol=1e-2, rtol=1e-2), "mismatch vs reference"

    print("KERNEL_OK")
</pallas_src>

<mosaic_0001>
module attributes {stable_mosaic.version = 11 : i64} {
  func.func @_attention_kernel(%arg0: i32, %arg1: memref<1x16x128xf32, #tpu.memory_space<vmem>>, %arg2: memref<128x384xf32, #tpu.memory_space<vmem>>, %arg3: memref<128x128xf32, #tpu.memory_space<vmem>>, %arg4: memref<1x128xf32, #tpu.memory_space<vmem>>, %arg5: memref<1x16x128xf32, #tpu.memory_space<vmem>>) attributes {dimension_semantics = [#tpu.dimension_semantics<parallel>], iteration_bounds = array<i64: 2>, scalar_prefetch = 0 : i64, scratch_operands = 0 : i64, tpu.core_type = #tpu.core_type<tc>, window_params = [{transform_indices = @transform_0, window_bounds = array<i64: 1, 16, 128>}, {pipeline_mode = #tpu.pipeline_mode<synchronous>, transform_indices = @transform_1, window_bounds = array<i64: 128, 384>}, {pipeline_mode = #tpu.pipeline_mode<synchronous>, transform_indices = @transform_2, window_bounds = array<i64: 128, 128>}, {pipeline_mode = #tpu.pipeline_mode<synchronous>, transform_indices = @transform_3, window_bounds = array<i64: 1, 128>}, {transform_indices = @transform_4, window_bounds = array<i64: 1, 16, 128>}]} {
    %c0 = arith.constant 0 : index
    %c0_0 = arith.constant 0 : index
    %c0_1 = arith.constant 0 : index
    %0 = vector.load %arg1[%c0, %c0_0, %c0_1] : memref<1x16x128xf32, #tpu.memory_space<vmem>>, vector<1x16x128xf32>
    %1 = vector.shape_cast %0 : vector<1x16x128xf32> to vector<16x128xf32>
    %2 = arith.truncf %1 : vector<16x128xf32> to vector<16x128xbf16>
    %c0_2 = arith.constant 0 : index
    %c0_3 = arith.constant 0 : index
    %3 = vector.load %arg2[%c0_2, %c0_3] : memref<128x384xf32, #tpu.memory_space<vmem>>, vector<128x384xf32>
    %4 = arith.truncf %3 : vector<128x384xf32> to vector<128x384xbf16>
    %cst = arith.constant dense<0.000000e+00> : vector<16x384xf32>
    %5 = tpu.matmul %2, %4, %cst {dimension_numbers = #tpu.dot_dimension_numbers<[1], [0], [0], [1], [0, 0, 1, 1], [], []>} : vector<16x128xbf16>, vector<128x384xbf16>, vector<16x384xf32> -> vector<16x384xf32>
    %6 = vector.extract_strided_slice %5 {offsets = [0, 0], sizes = [16, 128], strides = [1, 1]} : vector<16x384xf32> to vector<16x128xf32>
    %cst_4 = arith.constant 1.250000e-01 : f32
    %7 = vector.broadcast %cst_4 : f32 to vector<16x128xf32>
    %8 = arith.mulf %6, %7 : vector<16x128xf32>
    %9 = arith.truncf %8 : vector<16x128xf32> to vector<16x128xbf16>
    %10 = vector.extract_strided_slice %5 {offsets = [0, 128], sizes = [16, 128], strides = [1, 1]} : vector<16x384xf32> to vector<16x128xf32>
    %11 = arith.truncf %10 : vector<16x128xf32> to vector<16x128xbf16>
    %12 = vector.extract_strided_slice %5 {offsets = [0, 256], sizes = [16, 128], strides = [1, 1]} : vector<16x384xf32> to vector<16x128xf32>
    %13 = arith.truncf %12 : vector<16x128xf32> to vector<16x128xbf16>
    %14 = vector.shape_cast %9 : vector<16x128xbf16> to vector<1x16x128xbf16>
    %15 = vector.extract_strided_slice %14 {offsets = [0, 0, 0], sizes = [1, 16, 64], strides = [1, 1, 1]} : vector<1x16x128xbf16> to vector<1x16x64xbf16>
    %16 = vector.extract_strided_slice %14 {offsets = [0, 0, 64], sizes = [1, 16, 64], strides = [1, 1, 1]} : vector<1x16x128xbf16> to vector<1x16x64xbf16>
    %17 = vector.shape_cast %15 : vector<1x16x64xbf16> to vector<1x1x16x64xbf16>
    %18 = vector.shape_cast %16 : vector<1x16x64xbf16> to vector<1x1x16x64xbf16>
    %19 = tpu.concatenate %17, %18 in 0 : vector<1x1x16x64xbf16>, vector<1x1x16x64xbf16> -> vector<2x1x16x64xbf16>
    %20 = vector.shape_cast %19 : vector<2x1x16x64xbf16> to vector<2x16x64xbf16>
    %21 = vector.shape_cast %11 : vector<16x128xbf16> to vector<1x16x128xbf16>
    %22 = vector.extract_strided_slice %21 {offsets = [0, 0, 0], sizes = [1, 16, 64], strides = [1, 1, 1]} : vector<1x16x128xbf16> to vector<1x16x64xbf16>
    %23 = vector.extract_strided_slice %21 {offsets = [0, 0, 64], sizes = [1, 16, 64], strides = [1, 1, 1]} : vector<1x16x128xbf16> to vector<1x16x64xbf16>
    %24 = vector.shape_cast %22 : vector<1x16x64xbf16> to vector<1x1x16x64xbf16>
    %25 = vector.shape_cast %23 : vector<1x16x64xbf16> to vector<1x1x16x64xbf16>
    %26 = tpu.concatenate %24, %25 in 0 : vector<1x1x16x64xbf16>, vector<1x1x16x64xbf16> -> vector<2x1x16x64xbf16>
    %27 = vector.shape_cast %26 : vector<2x1x16x64xbf16> to vector<2x16x64xbf16>
    %28 = vector.shape_cast %13 : vector<16x128xbf16> to vector<1x16x128xbf16>
    %29 = vector.extract_strided_slice %28 {offsets = [0, 0, 0], sizes = [1, 16, 64], strides = [1, 1, 1]} : vector<1x16x128xbf16> to vector<1x16x64xbf16>
    %30 = vector.extract_strided_slice %28 {offsets = [0, 0, 64], sizes = [1, 16, 64], strides = [1, 1, 1]} : vector<1x16x128xbf16> to vector<1x16x64xbf16>
    %31 = vector.shape_cast %29 : vector<1x16x64xbf16> to vector<1x1x16x64xbf16>
    %32 = vector.shape_cast %30 : vector<1x16x64xbf16> to vector<1x1x16x64xbf16>
    %33 = tpu.concatenate %31, %32 in 0 : vector<1x1x16x64xbf16>, vector<1x1x16x64xbf16> -> vector<2x1x16x64xbf16>
    %34 = vector.shape_cast %33 : vector<2x1x16x64xbf16> to vector<2x16x64xbf16>
    "tpu.trace_start"() <{level = 10 : i32, message = "znd,zmd->znm"}> : () -> ()
    %cst_5 = arith.constant dense<0.000000e+00> : vector<2x16x16xf32>
    %35 = tpu.matmul %20, %27, %cst_5 {dimension_numbers = #tpu.dot_dimension_numbers<[2], [2], [1], [1], [0, 0, 0, 1, 1, 1], [0], [0]>} : vector<2x16x64xbf16>, vector<2x16x64xbf16>, vector<2x16x16xf32> -> vector<2x16x16xf32>
    "tpu.trace_stop"() : () -> ()
    %cst_6 = arith.constant dense<0xFF800000> : vector<2x16xf32>
    %36 = vector.multi_reduction <maximumf>, %35, %cst_6 [2] : vector<2x16x16xf32> to vector<2x16xf32>
    %37 = vector.shape_cast %36 : vector<2x16xf32> to vector<2x16x1xf32>
    %38 = vector.broadcast %37 : vector<2x16x1xf32> to vector<2x16x16xf32>
    %39 = arith.subf %35, %38 : vector<2x16x16xf32>
    %40 = math.exp %39 : vector<2x16x16xf32>
    %cst_7 = arith.constant dense<0.000000e+00> : vector<2x16xf32>
    %41 = vector.multi_reduction <add>, %40, %cst_7 [2] : vector<2x16x16xf32> to vector<2x16xf32>
    %42 = vector.shape_cast %41 : vector<2x16xf32> to vector<2x16x1xf32>
    %43 = tpu.reciprocal %42 {approx = true} : vector<2x16x1xf32> -> vector<2x16x1xf32>
    %44 = vector.broadcast %43 : vector<2x16x1xf32> to vector<2x16x16xf32>
    %45 = arith.mulf %40, %44 : vector<2x16x16xf32>
    %46 = arith.truncf %45 : vector<2x16x16xf32> to vector<2x16x16xbf16>
    "tpu.trace_start"() <{level = 10 : i32, message = "znm,zmd->znd"}> : () -> ()
    %cst_8 = arith.constant dense<0.000000e+00> : vector<2x16x64xf32>
    %47 = tpu.matmul %46, %34, %cst_8 {dimension_numbers = #tpu.dot_dimension_numbers<[2], [1], [1], [2], [0, 0, 0, 1, 1, 2], [0], [0]>} : vector<2x16x16xbf16>, vector<2x16x64xbf16>, vector<2x16x64xf32> -> vector<2x16x64xf32>
    "tpu.trace_stop"() : () -> ()
    %48 = arith.truncf %47 : vector<2x16x64xf32> to vector<2x16x64xbf16>
    %49 = vector.shape_cast %48 : vector<2x16x64xbf16> to vector<2x1x16x64xbf16>
    %50 = vector.extract_strided_slice %49 {offsets = [0, 0, 0, 0], sizes = [1, 1, 16, 64], strides = [1, 1, 1, 1]} : vector<2x1x16x64xbf16> to vector<1x1x16x64xbf16>
    %51 = vector.shape_cast %50 : vector<1x1x16x64xbf16> to vector<1x16x64xbf16>
    %52 = vector.extract_strided_slice %49 {offsets = [1, 0, 0, 0], sizes = [1, 1, 16, 64], strides = [1, 1, 1, 1]} : vector<2x1x16x64xbf16> to vector<1x1x16x64xbf16>
    %53 = vector.shape_cast %52 : vector<1x1x16x64xbf16> to vector<1x16x64xbf16>
    %54 = tpu.concatenate %51, %53 in 2 : vector<1x16x64xbf16>, vector<1x16x64xbf16> -> vector<1x16x128xbf16>
    %55 = vector.shape_cast %54 : vector<1x16x128xbf16> to vector<16x128xbf16>
    %c0_9 = arith.constant 0 : index
    %c0_10 = arith.constant 0 : index
    %56 = vector.load %arg3[%c0_9, %c0_10] : memref<128x128xf32, #tpu.memory_space<vmem>>, vector<128x128xf32>
    %57 = arith.truncf %56 : vector<128x128xf32> to vector<128x128xbf16>
    %cst_11 = arith.constant dense<0.000000e+00> : vector<16x128xf32>
    %58 = tpu.matmul %55, %57, %cst_11 {dimension_numbers = #tpu.dot_dimension_numbers<[1], [0], [0], [1], [0, 0, 1, 1], [], []>} : vector<16x128xbf16>, vector<128x128xbf16>, vector<16x128xf32> -> vector<16x128xf32>
    %c0_12 = arith.constant 0 : index
    %c0_13 = arith.constant 0 : index
    %59 = vector.load %arg4[%c0_12, %c0_13] : memref<1x128xf32, #tpu.memory_space<vmem>>, vector<1x128xf32>
    %60 = vector.broadcast %59 : vector<1x128xf32> to vector<16x128xf32>
    %61 = arith.addf %58, %60 : vector<16x128xf32>
    %62 = vector.shape_cast %61 : vector<16x128xf32> to vector<1x16x128xf32>
    %c0_14 = arith.constant 0 : index
    %c0_15 = arith.constant 0 : index
    %c0_16 = arith.constant 0 : index
    %63 = vector.load %arg5[%c0_14, %c0_15, %c0_16] : memref<1x16x128xf32, #tpu.memory_space<vmem>>, vector<1x16x128xf32>
    tpu.vector_store %arg5[%c0_14, %c0_15, %c0_16], %62 {strides = array<i32>} : memref<1x16x128xf32, #tpu.memory_space<vmem>>, vector<1x16x128xf32>,
    return
  }
  func.func @transform_0(%arg0: i32) -> (i32, i32, i32) {
    %c0_i32 = arith.constant 0 : i32
    %c0_i32_0 = arith.constant 0 : i32
    %c0_i32_1 = arith.constant 0 : i32
    return %arg0, %c0_i32, %c0_i32_0 : i32, i32, i32
  }
  func.func @transform_1(%arg0: i32) -> (i32, i32) {
    %c0_i32 = arith.constant 0 : i32
    %c0_i32_0 = arith.constant 0 : i32
    %c0_i32_1 = arith.constant 0 : i32
    return %c0_i32, %c0_i32_0 : i32, i32
  }
  func.func @transform_2(%arg0: i32) -> (i32, i32) {
    %c0_i32 = arith.constant 0 : i32
    %c0_i32_0 = arith.constant 0 : i32
    %c0_i32_1 = arith.constant 0 : i32
    return %c0_i32, %c0_i32_0 : i32, i32
  }
  func.func @transform_3(%arg0: i32) -> (i32, i32) {
    %c0_i32 = arith.constant 0 : i32
    %c0_i32_0 = arith.constant 0 : i32
    %c0_i32_1 = arith.constant 0 : i32
    return %c0_i32, %c0_i32_0 : i32, i32
  }
  func.func @transform_4(%arg0: i32) -> (i32, i32, i32) {
    %c0_i32 = arith.constant 0 : i32
    %c0_i32_0 = arith.constant 0 : i32
    %c0_i32_1 = arith.constant 0 : i32
    return %arg0, %c0_i32, %c0_i32_0 : i32, i32, i32
  }
}

module attributes {stable_mosaic.version = 11 : i64} {
  func.func @_attention_kernel(%arg0: i32, %arg1: memref<1x16x128xf32, #tpu.memory_space<vmem>>, %arg2: memref<128x384xf32, #tpu.memory_space<vmem>>, %arg3: memref<128x128xf32, #tpu.memory_space<vmem>>, %arg4: memref<1x128xf32, #tpu.memory_space<vmem>>, %arg5: memref<1x16x128xf32, #tpu.memory_space<vmem>>) attributes {dimension_semantics = [#tpu.dimension_semantics<parallel>], iteration_bounds = array<i64: 2>, scalar_prefetch = 0 : i64, scratch_operands = 0 : i64, tpu.core_type = #tpu.core_type<tc>, window_params = [{transform_indices = @transform_0, window_bounds = array<i64: 1, 16, 128>}, {pipeline_mode = #tpu.pipeline_mode<synchronous>, transform_indices = @transform_1, window_bounds = array<i64: 128, 384>}, {pipeline_mode = #tpu.pipeline_mode<synchronous>, transform_indices = @transform_2, window_bounds = array<i64: 128, 128>}, {pipeline_mode = #tpu.pipeline_mode<synchronous>, transform_indices = @transform_3, window_bounds = array<i64: 1, 128>}, {transform_indices = @transform_4, window_bounds = array<i64: 1, 16, 128>}]} {
    %c0 = arith.constant 0 : index
    %c0_0 = arith.constant 0 : index
    %c0_1 = arith.constant 0 : index
    %0 = vector.load %arg1[%c0, %c0_0, %c0_1] : memref<1x16x128xf32, #tpu.memory_space<vmem>>, vector<1x16x128xf32>
    %1 = vector.shape_cast %0 : vector<1x16x128xf32> to vector<16x128xf32>
    %2 = arith.truncf %1 : vector<16x128xf32> to vector<16x128xbf16>
    %c0_2 = arith.constant 0 : index
    %c0_3 = arith.constant 0 : index
    %3 = vector.load %arg2[%c0_2, %c0_3] : memref<128x384xf32, #tpu.memory_space<vmem>>, vector<128x384xf32>
    %4 = arith.truncf %3 : vector<128x384xf32> to vector<128x384xbf16>
    %cst = arith.constant dense<0.000000e+00> : vector<16x384xf32>
    %5 = tpu.matmul %2, %4, %cst {dimension_numbers = #tpu.dot_dimension_numbers<[1], [0], [0], [1], [0, 0, 1, 1], [], []>} : vector<16x128xbf16>, vector<128x384xbf16>, vector<16x384xf32> -> vector<16x384xf32>
    %6 = vector.extract_strided_slice %5 {offsets = [0, 0], sizes = [16, 128], strides = [1, 1]} : vector<16x384xf32> to vector<16x128xf32>
    %cst_4 = arith.constant 1.250000e-01 : f32
    %7 = vector.broadcast %cst_4 : f32 to vector<16x128xf32>
    %8 = arith.mulf %6, %7 : vector<16x128xf32>
    %9 = arith.truncf %8 : vector<16x128xf32> to vector<16x128xbf16>
    %10 = vector.extract_strided_slice %5 {offsets = [0, 128], sizes = [16, 128], strides = [1, 1]} : vector<16x384xf32> to vector<16x128xf32>
    %11 = arith.truncf %10 : vector<16x128xf32> to vector<16x128xbf16>
    %12 = vector.extract_strided_slice %5 {offsets = [0, 256], sizes = [16, 128], strides = [1, 1]} : vector<16x384xf32> to vector<16x128xf32>
    %13 = arith.truncf %12 : vector<16x128xf32> to vector<16x128xbf16>
    %14 = vector.shape_cast %9 : vector<16x128xbf16> to vector<1x16x128xbf16>
    %15 = vector.extract_strided_slice %14 {offsets = [0, 0, 0], sizes = [1, 16, 64], strides = [1, 1, 1]} : vector<1x16x128xbf16> to vector<1x16x64xbf16>
    %16 = vector.extract_strided_slice %14 {offsets = [0, 0, 64], sizes = [1, 16, 64], strides = [1, 1, 1]} : vector<1x16x128xbf16> to vector<1x16x64xbf16>
    %17 = vector.shape_cast %15 : vector<1x16x64xbf16> to vector<1x1x16x64xbf16>
    %18 = vector.shape_cast %16 : vector<1x16x64xbf16> to vector<1x1x16x64xbf16>
    %19 = tpu.concatenate %17, %18 in 0 : vector<1x1x16x64xbf16>, vector<1x1x16x64xbf16> -> vector<2x1x16x64xbf16>
    %20 = vector.shape_cast %19 : vector<2x1x16x64xbf16> to vector<2x16x64xbf16>
    %21 = vector.shape_cast %11 : vector<16x128xbf16> to vector<1x16x128xbf16>
    %22 = vector.extract_strided_slice %21 {offsets = [0, 0, 0], sizes = [1, 16, 64], strides = [1, 1, 1]} : vector<1x16x128xbf16> to vector<1x16x64xbf16>
    %23 = vector.extract_strided_slice %21 {offsets = [0, 0, 64], sizes = [1, 16, 64], strides = [1, 1, 1]} : vector<1x16x128xbf16> to vector<1x16x64xbf16>
    %24 = vector.shape_cast %22 : vector<1x16x64xbf16> to vector<1x1x16x64xbf16>
    %25 = vector.shape_cast %23 : vector<1x16x64xbf16> to vector<1x1x16x64xbf16>
    %26 = tpu.concatenate %24, %25 in 0 : vector<1x1x16x64xbf16>, vector<1x1x16x64xbf16> -> vector<2x1x16x64xbf16>
    %27 = vector.shape_cast %26 : vector<2x1x16x64xbf16> to vector<2x16x64xbf16>
    %28 = vector.shape_cast %13 : vector<16x128xbf16> to vector<1x16x128xbf16>
    %29 = vector.extract_strided_slice %28 {offsets = [0, 0, 0], sizes = [1, 16, 64], strides = [1, 1, 1]} : vector<1x16x128xbf16> to vector<1x16x64xbf16>
    %30 = vector.extract_strided_slice %28 {offsets = [0, 0, 64], sizes = [1, 16, 64], strides = [1, 1, 1]} : vector<1x16x128xbf16> to vector<1x16x64xbf16>
    %31 = vector.shape_cast %29 : vector<1x16x64xbf16> to vector<1x1x16x64xbf16>
    %32 = vector.shape_cast %30 : vector<1x16x64xbf16> to vector<1x1x16x64xbf16>
    %33 = tpu.concatenate %31, %32 in 0 : vector<1x1x16x64xbf16>, vector<1x1x16x64xbf16> -> vector<2x1x16x64xbf16>
    %34 = vector.shape_cast %33 : vector<2x1x16x64xbf16> to vector<2x16x64xbf16>
    "tpu.trace_start"() <{level = 10 : i32, message = "znd,zmd->znm"}> : () -> ()
    %cst_5 = arith.constant dense<0.000000e+00> : vector<2x16x16xf32>
    %35 = tpu.matmul %20, %27, %cst_5 {dimension_numbers = #tpu.dot_dimension_numbers<[2], [2], [1], [1], [0, 0, 0, 1, 1, 1], [0], [0]>} : vector<2x16x64xbf16>, vector<2x16x64xbf16>, vector<2x16x16xf32> -> vector<2x16x16xf32>
    "tpu.trace_stop"() : () -> ()
    %cst_6 = arith.constant dense<0xFF800000> : vector<2x16xf32>
    %36 = vector.multi_reduction <maximumf>, %35, %cst_6 [2] : vector<2x16x16xf32> to vector<2x16xf32>
    %37 = vector.shape_cast %36 : vector<2x16xf32> to vector<2x16x1xf32>
    %38 = vector.broadcast %37 : vector<2x16x1xf32> to vector<2x16x16xf32>
    %39 = arith.subf %35, %38 : vector<2x16x16xf32>
    %40 = math.exp %39 : vector<2x16x16xf32>
    %cst_7 = arith.constant dense<0.000000e+00> : vector<2x16xf32>
    %41 = vector.multi_reduction <add>, %40, %cst_7 [2] : vector<2x16x16xf32> to vector<2x16xf32>
    %42 = vector.shape_cast %41 : vector<2x16xf32> to vector<2x16x1xf32>
    %43 = tpu.reciprocal %42 {approx = true} : vector<2x16x1xf32> -> vector<2x16x1xf32>
    %44 = vector.broadcast %43 : vector<2x16x1xf32> to vector<2x16x16xf32>
    %45 = arith.mulf %40, %44 : vector<2x16x16xf32>
    %46 = arith.truncf %45 : vector<2x16x16xf32> to vector<2x16x16xbf16>
    "tpu.trace_start"() <{level = 10 : i32, message = "znm,zmd->znd"}> : () -> ()
    %cst_8 = arith.constant dense<0.000000e+00> : vector<2x16x64xf32>
    %47 = tpu.matmul %46, %34, %cst_8 {dimension_numbers = #tpu.dot_dimension_numbers<[2], [1], [1], [2], [0, 0, 0, 1, 1, 2], [0], [0]>} : vector<2x16x16xbf16>, vector<2x16x64xbf16>, vector<2x16x64xf32> -> vector<2x16x64xf32>
    "tpu.trace_stop"() : () -> ()
    %48 = arith.truncf %47 : vector<2x16x64xf32> to vector<2x16x64xbf16>
    %49 = vector.shape_cast %48 : vector<2x16x64xbf16> to vector<2x1x16x64xbf16>
    %50 = vector.extract_strided_slice %49 {offsets = [0, 0, 0, 0], sizes = [1, 1, 16, 64], strides = [1, 1, 1, 1]} : vector<2x1x16x64xbf16> to vector<1x1x16x64xbf16>
    %51 = vector.shape_cast %50 : vector<1x1x16x64xbf16> to vector<1x16x64xbf16>
    %52 = vector.extract_strided_slice %49 {offsets = [1, 0, 0, 0], sizes = [1, 1, 16, 64], strides = [1, 1, 1, 1]} : vector<2x1x16x64xbf16> to vector<1x1x16x64xbf16>
    %53 = vector.shape_cast %52 : vector<1x1x16x64xbf16> to vector<1x16x64xbf16>
    %54 = tpu.concatenate %51, %53 in 2 : vector<1x16x64xbf16>, vector<1x16x64xbf16> -> vector<1x16x128xbf16>
    %55 = vector.shape_cast %54 : vector<1x16x128xbf16> to vector<16x128xbf16>
    %c0_9 = arith.constant 0 : index
    %c0_10 = arith.constant 0 : index
    %56 = vector.load %arg3[%c0_9, %c0_10] : memref<128x128xf32, #tpu.memory_space<vmem>>, vector<128x128xf32>
    %57 = arith.truncf %56 : vector<128x128xf32> to vector<128x128xbf16>
    %cst_11 = arith.constant dense<0.000000e+00> : vector<16x128xf32>
    %58 = tpu.matmul %55, %57, %cst_11 {dimension_numbers = #tpu.dot_dimension_numbers<[1], [0], [0], [1], [0, 0, 1, 1], [], []>} : vector<16x128xbf16>, vector<128x128xbf16>, vector<16x128xf32> -> vector<16x128xf32>
    %c0_12 = arith.constant 0 : index
    %c0_13 = arith.constant 0 : index
    %59 = vector.load %arg4[%c0_12, %c0_13] : memref<1x128xf32, #tpu.memory_space<vmem>>, vector<1x128xf32>
    %60 = vector.broadcast %59 : vector<1x128xf32> to vector<16x128xf32>
    %61 = arith.addf %58, %60 : vector<16x128xf32>
    %62 = vector.shape_cast %61 : vector<16x128xf32> to vector<1x16x128xf32>
    %c0_14 = arith.constant 0 : index
    %c0_15 = arith.constant 0 : index
    %c0_16 = arith.constant 0 : index
    %63 = vector.load %arg5[%c0_14, %c0_15, %c0_16] : memref<1x16x128xf32, #tpu.memory_space<vmem>>, vector<1x16x128xf32>
    tpu.vector_store %arg5[%c0_14, %c0_15, %c0_16], %62 {strides = array<i32>} : memref<1x16x128xf32, #tpu.memory_space<vmem>>, vector<1x16x128xf32>,
    return
  }
  func.func @transform_0(%arg0: i32) -> (i32, i32, i32) {
    %c0_i32 = arith.constant 0 : i32
    %c0_i32_0 = arith.constant 0 : i32
    %c0_i32_1 = arith.constant 0 : i32
    return %arg0, %c0_i32, %c0_i32_0 : i32, i32, i32
  }
  func.func @transform_1(%arg0: i32) -> (i32, i32) {
    %c0_i32 = arith.constant 0 : i32
    %c0_i32_0 = arith.constant 0 : i32
    %c0_i32_1 = arith.constant 0 : i32
    return %c0_i32, %c0_i32_0 : i32, i32
  }
  func.func @transform_2(%arg0: i32) -> (i32, i32) {
    %c0_i32 = arith.constant 0 : i32
    %c0_i32_0 = arith.constant 0 : i32
    %c0_i32_1 = arith.constant 0 : i32
    return %c0_i32, %c0_i32_0 : i32, i32
  }
  func.func @transform_3(%arg0: i32) -> (i32, i32) {
    %c0_i32 = arith.constant 0 : i32
    %c0_i32_0 = arith.constant 0 : i32
    %c0_i32_1 = arith.constant 0 : i32
    return %c0_i32, %c0_i32_0 : i32, i32
  }
  func.func @transform_4(%arg0: i32) -> (i32, i32, i32) {
    %c0_i32 = arith.constant 0 : i32
    %c0_i32_0 = arith.constant 0 : i32
    %c0_i32_1 = arith.constant 0 : i32
    return %arg0, %c0_i32, %c0_i32_0 : i32, i32, i32
  }
}

</mosaic_0001>

<llo_original>
// kernel: tpu_custom_call.1
$region0: #{tpu_custom_call.1}
  #allocation0 [shape = 'u32[]', space=smem, size = 0x4, offset = 0x4, fixed_abs, tag = 'smem constant byte address 0x4 - core index']
  #allocation1 [shape = 'u32[72,128]{1,0:T(1,128)}', space=vmem, size = 0x9000, scoped, tag = 'internal scratch']
  %s0 = inlined_call_operand.hbm [shape: f32[2,16,128], index: 0, kind: input, shape index: {}]
  %s1 = inlined_call_operand.hbm [shape: f32[128,384], index: 1, kind: input, shape index: {}]
  %s2 = inlined_call_operand.hbm [shape: f32[128,128], index: 2, kind: input, shape index: {}]
  %s3 = inlined_call_operand.vmem [shape: f32[1,128], index: 3, kind: input, shape index: {}]
  %s4 = inlined_call_operand.hbm [shape: f32[2,16,128], index: 4, kind: output, shape index: {}]
  %s5 = sld [smem:[#allocation0]]
  $region61: #{tpu_custom_call.1} parent=0
    _
  %s7 = ssub.s32 1, %s5
  %s8 = scalar_select 0, %s7, %s5
  $region1: #{tpu_custom_call.1} parent=0
    #allocation2 [shape = 'u8[16384]{0}', space=vmem, size = 0x4000, scoped, tag = 'input window, operand 0']
    #allocation3 [shape = 's32[2]{0}', space=sflag, size = 0x8, scoped, tag = 'scoped memory for tpu_custom_call.1']
    #allocation4 [shape = 's32[2]{0}', space=sflag, size = 0x8, scoped, tag = 'scoped memory for tpu_custom_call.1']
    #allocation5 [shape = 'u8[196608]{0}', space=vmem, size = 0x30000, scoped, tag = 'input window, operand 1, single buffered']
    #allocation6 [shape = 's32[1]{0}', space=sflag, size = 0x4, scoped, tag = 'scoped memory for tpu_custom_call.1']
    #allocation7 [shape = 'u8[65536]{0}', space=vmem, size = 0x10000, scoped, tag = 'input window, operand 2, single buffered']
    #allocation8 [shape = 'u8[16384]{0}', space=vmem, size = 0x4000, scoped, tag = 'output window, operand 0']
    %9 = vsyncpa [#allocation3], 0
    %s10 = scalar_lea.sflag [#allocation3], 1
    %11 = vsyncpa %s10, 0
    %12 = vsyncpa [#allocation6], 0
    %13 = vsyncpa [#allocation4], 0
    %s14 = scalar_lea.sflag [#allocation4], 1
    %15 = vsyncpa %s14, 0
    loop: start=0, step=1, limit=4
    $region2: #{tpu_custom_call.1} parent=1 // loop_pre_header
      _
    $region3: #{tpu_custom_call.1} parent=1 // loop_header
      %s17 = sphi 0, %s21
      %p18 = scmp.ge.s32.totalorder %s17, 4
      %s27 = sphi 0, %s29
      %s30 = sphi 0, %s27
      %s31 = sphi 0, %s30
      %s47 = sphi 0, %s31
      %s51 = sphi 0, %s51
      %s53 = sphi 0, %s51
      %s54 = sphi 0, %s53
      %s68 = sphi 0, %s54
      %s72 = sphi 0, %s72
      %s74 = sphi 0, %s72
      %s75 = sphi 0, %s74
      %s89 = sphi 0, %s75
      %s93 = sphi 0, %s93
      %s95 = sphi 0, %s93
      %s96 = sphi 0, %s95
      %s110 = sphi 0, %s96
      %s116 = sphi 0, %s118
      %s119 = sphi 0, %s116
      %s120 = sphi 0, %s119
      %s136 = sphi 0, %s120
    $region4: #{tpu_custom_call.1} parent=1 // loop_header_branch
      %20 = sbr.rel (%p18) target = $region8
    $region5: #{tpu_custom_call.1} parent=1 // loop_body
      %s22 = ssub.s32 %s17, 1
      %s23 = ssub.s32 %s17, 2
      %s24 = sadd.s32 %s17, 1
      %s25 = ssub.s32 %s17, %s24
      %p26 = scmp.eq.s32.totalorder %s25, 0
      %s28 = sadd.s32 %s27, 1
      %s29 = scalar_select %p26, %s27, %s28
      %p32 = pneg %p26
      %p33 = scmp.eq.s32.totalorder %s17, 1
      %p34 = por %p32, %p33
      %p35 = scmp.ne.s32.totalorder %s27, %s30
      %p36 = scmp.eq.s32.totalorder %s17, 0
      %p37 = por %p35, %p36
      %p38 = scmp.ne.s32.totalorder %s27, %s30
      %p39 = scmp.eq.s32.totalorder %s22, 1
      %p40 = por %p38, %p39
      %p41 = scmp.ne.s32.totalorder %s30, %s31
      %p42 = scmp.eq.s32.totalorder %s22, 0
      %p43 = por %p41, %p42
      %p44 = scmp.ne.s32.totalorder %s30, %s31
      %p45 = scmp.eq.s32.totalorder %s23, 1
      %p46 = por %p44, %p45
      %p48 = scmp.ne.s32.totalorder %s31, %s47
      %p49 = scmp.eq.s32.totalorder %s23, 0
      %p50 = por %p48, %p49
      %s52 = sadd.s32 %s51, 1
      %p55 = scmp.eq.s32.totalorder %s17, 1
      %p56 = scmp.ne.s32.totalorder %s51, %s53
      %p57 = scmp.eq.s32.totalorder %s17, 0
      %p58 = por %p56, %p57
      %p59 = scmp.ne.s32.totalorder %s51, %s53
      %p60 = scmp.eq.s32.totalorder %s22, 1
      %p61 = por %p59, %p60
      %p62 = scmp.ne.s32.totalorder %s53, %s54
      %p63 = scmp.eq.s32.totalorder %s22, 0
      %p64 = por %p62, %p63
      %p65 = scmp.ne.s32.totalorder %s53, %s54
      %p66 = scmp.eq.s32.totalorder %s23, 1
      %p67 = por %p65, %p66
      %p69 = scmp.ne.s32.totalorder %s54, %s68
      %p70 = scmp.eq.s32.totalorder %s23, 0
      %p71 = por %p69, %p70
      %s73 = sadd.s32 %s72, 1
      %p76 = scmp.eq.s32.totalorder %s17, 1
      %p77 = scmp.ne.s32.totalorder %s72, %s74
      %p78 = scmp.eq.s32.totalorder %s17, 0
      %p79 = por %p77, %p78
      %p80 = scmp.ne.s32.totalorder %s72, %s74
      %p81 = scmp.eq.s32.totalorder %s22, 1
      %p82 = por %p80, %p81
      %p83 = scmp.ne.s32.totalorder %s74, %s75
      %p84 = scmp.eq.s32.totalorder %s22, 0
      %p85 = por %p83, %p84
      %p86 = scmp.ne.s32.totalorder %s74, %s75
      %p87 = scmp.eq.s32.totalorder %s23, 1
      %p88 = por %p86, %p87
      %p90 = scmp.ne.s32.totalorder %s75, %s89
      %p91 = scmp.eq.s32.totalorder %s23, 0
      %p92 = por %p90, %p91
      %s94 = sadd.s32 %s93, 1
      %p97 = scmp.eq.s32.totalorder %s17, 1
      %p98 = scmp.ne.s32.totalorder %s93, %s95
      %p99 = scmp.eq.s32.totalorder %s17, 0
      %p100 = por %p98, %p99
      %p101 = scmp.ne.s32.totalorder %s93, %s95
      %p102 = scmp.eq.s32.totalorder %s22, 1
      %p103 = por %p101, %p102
      %p104 = scmp.ne.s32.totalorder %s95, %s96
      %p105 = scmp.eq.s32.totalorder %s22, 0
      %p106 = por %p104, %p105
      %p107 = scmp.ne.s32.totalorder %s95, %s96
      %p108 = scmp.eq.s32.totalorder %s23, 1
      %p109 = por %p107, %p108
      %p111 = scmp.ne.s32.totalorder %s96, %s110
      %p112 = scmp.eq.s32.totalorder %s23, 0
      %p113 = por %p111, %p112
      %s114 = ssub.s32 %s17, %s24
      %p115 = scmp.eq.s32.totalorder %s114, 0
      %s117 = sadd.s32 %s116, 1
      %s118 = scalar_select %p115, %s116, %s117
      %p121 = pneg %p115
      %p122 = scmp.eq.s32.totalorder %s17, 1
      %p123 = por %p121, %p122
      %p124 = scmp.ne.s32.totalorder %s116, %s119
      %p125 = scmp.eq.s32.totalorder %s17, 0
      %p126 = por %p124, %p125
      %p127 = scmp.ne.s32.totalorder %s116, %s119
      %p128 = scmp.eq.s32.totalorder %s22, 1
      %p129 = por %p127, %p128
      %p130 = scmp.ne.s32.totalorder %s119, %s120
      %p131 = scmp.eq.s32.totalorder %s22, 0
      %p132 = por %p130, %p131
      %p133 = scmp.ne.s32.totalorder %s119, %s120
      %p134 = scmp.eq.s32.totalorder %s23, 1
      %p135 = por %p133, %p134
      %p137 = scmp.ne.s32.totalorder %s120, %s136
      %p138 = scmp.eq.s32.totalorder %s23, 0
      %p139 = por %p137, %p138
      %p140 = scmp.le.s32.totalorder 1, %s17
      %p141 = scmp.lt.s32.totalorder %s17, 3
      %p142 = pnand %p140, %p141
      %p143 = pneg %p142
      // Predicated region
      $region9: #{tpu_custom_call.1} parent=5 // pred_check
        _
      $region10: #{tpu_custom_call.1} parent=5 // pred_check_branch
        %145 = sbr.rel (%p142) target = $region12
      $region11: #{tpu_custom_call.1} parent=5 // pred_region
        %s146 = ssub.s32 %s17, 1
        // Predicated region
        $region13: #{tpu_custom_call.1} parent=11 // pred_check
          %p147 = pneg %p64
        $region14: #{tpu_custom_call.1} parent=11 // pred_check_branch
          %149 = sbr.rel (%p147) target = $region16
        $region15: #{tpu_custom_call.1} parent=11 // pred_region
          %151 = vsyncadd [#allocation6], 0
          %s152 = sshll.u32 %s1, 4
          %s153 = int_to_ptr.hbm [resolvable:$true] %s152
          %s154 = sshll.u32 [#allocation5], 4
          %s155 = int_to_ptr.vmem [resolvable:$true] %s154
          %160 = dma.hbm_to_vmem [thread:$0]  %s153, 6144, %s155, [#allocation6], 384, 384, 24
        $region16: #{tpu_custom_call.1} parent=11 // pred_fallthru
          _
        // Predicated region
        $region17: #{tpu_custom_call.1} parent=11 // pred_check
          %p161 = pneg %p85
        $region18: #{tpu_custom_call.1} parent=11 // pred_check_branch
          %163 = sbr.rel (%p161) target = $region20
        $region19: #{tpu_custom_call.1} parent=11 // pred_region
          %165 = vsyncadd [#allocation6], 0
          %s166 = sshll.u32 %s2, 4
          %s167 = int_to_ptr.hbm [resolvable:$true] %s166
          %s168 = sshll.u32 [#allocation7], 4
          %s169 = int_to_ptr.vmem [resolvable:$true] %s168
          %174 = dma.hbm_to_vmem [thread:$0]  %s167, 2048, %s169, [#allocation6], 128, 128, 8
        $region20: #{tpu_custom_call.1} parent=11 // pred_fallthru
          _
        // Predicated region
        $region21: #{tpu_custom_call.1} parent=11 // pred_check
          %p175 = pneg %p106
        $region22: #{tpu_custom_call.1} parent=11 // pred_check_branch
          %177 = sbr.rel (%p175) target = $region24
        $region23: #{tpu_custom_call.1} parent=11 // pred_region
          _
        $region24: #{tpu_custom_call.1} parent=11 // pred_fallthru
          _
      $region12: #{tpu_custom_call.1} parent=5 // pred_fallthru
        _
      %p178 = scmp.lt.s32.totalorder %s17, 2
      // Predicated region
      $region25: #{tpu_custom_call.1} parent=5 // pred_check
        %p179 = pneg %p178
      $region26: #{tpu_custom_call.1} parent=5 // pred_check_branch
        %181 = sbr.rel (%p179) target = $region28
      $region27: #{tpu_custom_call.1} parent=5 // pred_region
        // Predicated region
        $region29: #{tpu_custom_call.1} parent=27 // pred_check
          %p182 = pneg %p37
        $region30: #{tpu_custom_call.1} parent=27 // pred_check_branch
          %184 = sbr.rel (%p182) target = $region32
        $region31: #{tpu_custom_call.1} parent=27 // pred_region
          %s185 = sand.u32 %s27, 1
          %s186 = scalar_lea.sflag [#allocation3], %s185
          %s187 = sand.u32 %s27, 1
          %s188 = smul.addr %s187, 16
          %s189 = scalar_lea.vmem [#allocation2], %s188
          %191 = vsyncadd %s186, 0
          %s192 = smul.addr %s17, 2
          %s193 = smul.addr %s192, 8
          %s194 = scalar_lea.hbm %s0, %s193
          %s195 = sshll.u32 %s194, 4
          %s196 = int_to_ptr.hbm [resolvable:$true] %s195
          %s197 = sshll.u32 %s189, 4
          %s198 = int_to_ptr.vmem [resolvable:$true] %s197
          %203 = dma.hbm_to_vmem [thread:$0]  %s196, 256, %s198, %s186, 128, 128, 8
        $region32: #{tpu_custom_call.1} parent=27 // pred_fallthru
          _
      $region28: #{tpu_custom_call.1} parent=5 // pred_fallthru
        _
      %p204 = scmp.le.s32.totalorder 1, %s17
      %p205 = scmp.lt.s32.totalorder %s17, 3
      %p206 = pnand %p204, %p205
      %p207 = pneg %p206
      // Predicated region
      $region33: #{tpu_custom_call.1} parent=5 // pred_check
        _
      $region34: #{tpu_custom_call.1} parent=5 // pred_check_branch
        %209 = sbr.rel (%p206) target = $region36
      $region35: #{tpu_custom_call.1} parent=5 // pred_region
        %s210 = ssub.s32 %s17, 1
        %s211 = sand.u32 %s30, 1
        %s212 = scalar_lea.sflag [#allocation3], %s211
        %s213 = sand.u32 %s30, 1
        %s214 = smul.addr %s213, 16
        %s215 = scalar_lea.vmem [#allocation2], %s214
        // Predicated region
        $region37: #{tpu_custom_call.1} parent=35 // pred_check
          %p216 = pneg %p43
        $region38: #{tpu_custom_call.1} parent=35 // pred_check_branch
          %218 = sbr.rel (%p216) target = $region40
        $region39: #{tpu_custom_call.1} parent=35 // pred_region
          %220 = dma.done %s212, 256
        $region40: #{tpu_custom_call.1} parent=35 // pred_fallthru
          _
        // Predicated region
        $region41: #{tpu_custom_call.1} parent=35 // pred_check
          %p221 = pneg %p64
        $region42: #{tpu_custom_call.1} parent=35 // pred_check_branch
          %223 = sbr.rel (%p221) target = $region44
        $region43: #{tpu_custom_call.1} parent=35 // pred_region
          %225 = dma.done [#allocation6], 6144
        $region44: #{tpu_custom_call.1} parent=35 // pred_fallthru
          _
        // Predicated region
        $region45: #{tpu_custom_call.1} parent=35 // pred_check
          %p226 = pneg %p85
        $region46: #{tpu_custom_call.1} parent=35 // pred_check_branch
          %228 = sbr.rel (%p226) target = $region48
        $region47: #{tpu_custom_call.1} parent=35 // pred_region
          %230 = dma.done [#allocation6], 2048
        $region48: #{tpu_custom_call.1} parent=35 // pred_fallthru
          _
        %s231 = sand.u32 %s30, 1
        %s232 = scalar_lea.sflag [#allocation3], %s231
        %s233 = sand.u32 %s30, 1
        %s234 = smul.addr %s233, 16
        %s235 = scalar_lea.vmem [#allocation2], %s234
        %p236 = pneg %p43
        %p237 = pneg %p40
        %p238 = pneg %p64
        %p239 = pneg %p61
        %p240 = pneg %p85
        %p241 = pneg %p82
        %p242 = pneg %p106
        %p243 = pneg %p103
        %p244 = pneg %p132
        %p245 = pneg %p129
        %s246 = sand.u32 %s119, 1
        %s247 = scalar_lea.sflag [#allocation4], %s246
        %s248 = sand.u32 %s119, 1
        %s249 = smul.addr %s248, 16
        %s250 = scalar_lea.vmem [#allocation8], %s249
        %v252 = vld [vmem:[%s215] sm:$0xff]
        %v253 = vld [vmem:[%s215 + $0x8] sm:$0xff]
        %v254 = vpack.c.bf16 %v253, %v252
        %v255 = vld [vmem:[#allocation5] sm:$0xff]
        %v256 = vld [vmem:[#allocation5 + $0x8] sm:$0xff]
        %v257 = vld [vmem:[#allocation5 + $0x10] sm:$0xff]
        %v258 = vld [vmem:[#allocation5 + $0x18] sm:$0xff]
        %v259 = vld [vmem:[#allocation5 + $0x20] sm:$0xff]
        %v260 = vld [vmem:[#allocation5 + $0x28] sm:$0xff]
        %v261 = vld [vmem:[#allocation5 + $0x30] sm:$0xff]
        %v262 = vld [vmem:[#allocation5 + $0x38] sm:$0xff]
        %v263 = vld [vmem:[#allocation5 + $0x40] sm:$0xff]
        %v264 = vld [vmem:[#allocation5 + $0x48] sm:$0xff]
        %v265 = vld [vmem:[#allocation5 + $0x50] sm:$0xff]
        %v266 = vld [vmem:[#allocation5 + $0x58] sm:$0xff]
        %v267 = vld [vmem:[#allocation5 + $0x60] sm:$0xff]
        %v268 = vld [vmem:[#allocation5 + $0x68] sm:$0xff]
        %v269 = vld [vmem:[#allocation5 + $0x70] sm:$0xff]
        %v270 = vld [vmem:[#allocation5 + $0x78] sm:$0xff]
        %v271 = vld [vmem:[#allocation5 + $0x80] sm:$0xff]
        %v272 = vld [vmem:[#allocation5 + $0x88] sm:$0xff]
        %v273 = vld [vmem:[#allocation5 + $0x90] sm:$0xff]
        %v274 = vld [vmem:[#allocation5 + $0x98] sm:$0xff]
        %v275 = vld [vmem:[#allocation5 + $0xa0] sm:$0xff]
        %v276 = vld [vmem:[#allocation5 + $0xa8] sm:$0xff]
        %v277 = vld [vmem:[#allocation5 + $0xb0] sm:$0xff]
        %v278 = vld [vmem:[#allocation5 + $0xb8] sm:$0xff]
        %v279 = vld [vmem:[#allocation5 + $0xc0] sm:$0xff]
        %v280 = vld [vmem:[#allocation5 + $0xc8] sm:$0xff]
        %v281 = vld [vmem:[#allocation5 + $0xd0] sm:$0xff]
        %v282 = vld [vmem:[#allocation5 + $0xd8] sm:$0xff]
        %v283 = vld [vmem:[#allocation5 + $0xe0] sm:$0xff]
        %v284 = vld [vmem:[#allocation5 + $0xe8] sm:$0xff]
        %v285 = vld [vmem:[#allocation5 + $0xf0] sm:$0xff]
        %v286 = vld [vmem:[#allocation5 + $0xf8] sm:$0xff]
        %v287 = vld [vmem:[#allocation5 + $0x100] sm:$0xff]
        %v288 = vld [vmem:[#allocation5 + $0x108] sm:$0xff]
        %v289 = vld [vmem:[#allocation5 + $0x110] sm:$0xff]
        %v290 = vld [vmem:[#allocation5 + $0x118] sm:$0xff]
        %v291 = vld [vmem:[#allocation5 + $0x120] sm:$0xff]
        %v292 = vld [vmem:[#allocation5 + $0x128] sm:$0xff]
        %v293 = vld [vmem:[#allocation5 + $0x130] sm:$0xff]
        %v294 = vld [vmem:[#allocation5 + $0x138] sm:$0xff]
        %v295 = vld [vmem:[#allocation5 + $0x140] sm:$0xff]
        %v296 = vld [vmem:[#allocation5 + $0x148] sm:$0xff]
        %v297 = vld [vmem:[#allocation5 + $0x150] sm:$0xff]
        %v298 = vld [vmem:[#allocation5 + $0x158] sm:$0xff]
        %v299 = vld [vmem:[#allocation5 + $0x160] sm:$0xff]
        %v300 = vld [vmem:[#allocation5 + $0x168] sm:$0xff]
        %v301 = vld [vmem:[#allocation5 + $0x170] sm:$0xff]
        %v302 = vld [vmem:[#allocation5 + $0x178] sm:$0xff]
        %v303 = vpack.c.bf16 %v258, %v255
        %v304 = vpack.c.bf16 %v259, %v256
        %v305 = vpack.c.bf16 %v260, %v257
        %v306 = vpack.c.bf16 %v264, %v261
        %v307 = vpack.c.bf16 %v265, %v262
        %v308 = vpack.c.bf16 %v266, %v263
        %v309 = vpack.c.bf16 %v270, %v267
        %v310 = vpack.c.bf16 %v271, %v268
        %v311 = vpack.c.bf16 %v272, %v269
        %v312 = vpack.c.bf16 %v276, %v273
        %v313 = vpack.c.bf16 %v277, %v274
        %v314 = vpack.c.bf16 %v278, %v275
        %v315 = vpack.c.bf16 %v282, %v279
        %v316 = vpack.c.bf16 %v283, %v280
        %v317 = vpack.c.bf16 %v284, %v281
        %v318 = vpack.c.bf16 %v288, %v285
        %v319 = vpack.c.bf16 %v289, %v286
        %v320 = vpack.c.bf16 %v290, %v287
        %v321 = vpack.c.bf16 %v294, %v291
        %v322 = vpack.c.bf16 %v295, %v292
        %v323 = vpack.c.bf16 %v296, %v293
        %v324 = vpack.c.bf16 %v300, %v297
        %v325 = vpack.c.bf16 %v301, %v298
        %v326 = vpack.c.bf16 %v302, %v299
        %327 = vmatpush.bf16.msra.mxu0 %v324
        %328 = vmatpush.bf16.msra.mxu0 %v321
        %329 = vmatpush.bf16.msra.mxu0 %v318
        %330 = vmatpush.bf16.msra.mxu0 %v315
        %331 = vmatpush.bf16.msra.mxu0 %v312
        %332 = vmatpush.bf16.msra.mxu0 %v309
        %333 = vmatpush.bf16.msra.mxu0 %v306
        %334 = vmatpush.bf16.msra.mxu0 %v303
        %335 = vmatmul.bf16.gmra.mxu0 %v254
        %v336 = vpop.f32.mrf.mxu0
        %v337 = vadd.f32 0.0, %v336
        %v338 = vpop.f32.mrf.mxu0
        %v339 = vadd.f32 0.0, %v338
        %340 = vdwg.mxu0
        %341 = vmatpush.bf16.msra.mxu0 %v325
        %342 = vmatpush.bf16.msra.mxu0 %v322
        %343 = vmatpush.bf16.msra.mxu0 %v319
        %344 = vmatpush.bf16.msra.mxu0 %v316
        %345 = vmatpush.bf16.msra.mxu0 %v313
        %346 = vmatpush.bf16.msra.mxu0 %v310
        %347 = vmatpush.bf16.msra.mxu0 %v307
        %348 = vmatpush.bf16.msra.mxu0 %v304
        %349 = vmatmul.bf16.gmra.mxu0 %v254
        %v350 = vpop.f32.mrf.mxu0
        %v351 = vadd.f32 0.0, %v350
        %v352 = vpop.f32.mrf.mxu0
        %v353 = vadd.f32 0.0, %v352
        %354 = vdwg.mxu0
        %355 = vmatpush.bf16.msra.mxu0 %v326
        %356 = vmatpush.bf16.msra.mxu0 %v323
        %357 = vmatpush.bf16.msra.mxu0 %v320
        %358 = vmatpush.bf16.msra.mxu0 %v317
        %359 = vmatpush.bf16.msra.mxu0 %v314
        %360 = vmatpush.bf16.msra.mxu0 %v311
        %361 = vmatpush.bf16.msra.mxu0 %v308
        %362 = vmatpush.bf16.msra.mxu0 %v305
        %363 = vmatmul.bf16.gmra.mxu0 %v254
        %v364 = vpop.f32.mrf.mxu0
        %v365 = vadd.f32 0.0, %v364
        %v366 = vpop.f32.mrf.mxu0
        %v367 = vadd.f32 0.0, %v366
        %368 = vdwg.mxu0
        %v369 = vmul.f32 %v337, 0.125
        %v370 = vmul.f32 %v339, 0.125
        %v371 = vpack.c.bf16 %v369, %v369
        %v372 = vpack.c.bf16 %v370, %v370
        %v373 = vpack.c.bf16 %v351, %v351
        %v374 = vpack.c.bf16 %v353, %v353
        %v375 = vpack.c.bf16 %v365, %v365
        %v376 = vpack.c.bf16 %v367, %v367
        %379 = vrot.lane.b32.xlu0 %v371, 64
        %v380 = vpop.permute.xlu0 %379
        %381 = vrot.lane.b32.xlu0 %v372, 64
        %v382 = vpop.permute.xlu0 %381
        %385 = vrot.lane.b32.xlu0 %v373, 64
        %v386 = vpop.permute.xlu0 %385
        %387 = vrot.lane.b32.xlu0 %v374, 64
        %v388 = vpop.permute.xlu0 %387
        %391 = vrot.lane.b32.xlu0 %v375, 64
        %v392 = vpop.permute.xlu0 %391
        %393 = vrot.lane.b32.xlu0 %v376, 64
        %v394 = vpop.permute.xlu0 %393
        %v395 = vunpack.c.l.b16 %v371
        %v396 = vunpack.c.l.b16 %v372
        %v397 = vpack.c.b16 %v396, %v395
        %v398 = vunpack.c.l.b16 %v373
        %v399 = vunpack.c.l.b16 %v374
        %v400 = vpack.c.b16 %v399, %v398
        %vm401 = vcmask 523264
        %v403 = vsel %vm401, %v397, 0
        %v406 = vsel %vm401, %v400, 0
        %408 = vmatpush.bf16.xpose.msra.mxu0 0
        %409 = vmatpush.bf16.xpose.msra.mxu0 0
        %410 = vmatpush.bf16.xpose.msra.mxu0 0
        %411 = vmatpush.bf16.xpose.msra.mxu0 0
        %412 = vmatpush.bf16.xpose.msra.mxu0 0
        %413 = vmatpush.bf16.xpose.msra.mxu0 0
        %414 = vmatpush.bf16.xpose.msra.mxu0 0
        %415 = vmatpush.bf16.xpose.msra.mxu0 %v406
        %416 = vmatmul.bf16.gmra.mxu0 %v403
        %v417 = vpop.f32.mrf.mxu0
        %v418 = vadd.f32 0.0, %v417
        %v419 = vpop.f32.mrf.mxu0
        %v420 = vadd.f32 0.0, %v419
        %421 = vdwg.mxu0
        %v422 = vunpack.c.l.b16 %v380
        %v423 = vunpack.c.l.b16 %v382
        %v424 = vpack.c.b16 %v423, %v422
        %v425 = vunpack.c.l.b16 %v386
        %v426 = vunpack.c.l.b16 %v388
        %v427 = vpack.c.b16 %v426, %v425
        %v429 = vsel %vm401, %v424, 0
        %v432 = vsel %vm401, %v427, 0
        %434 = vmatpush.bf16.xpose.msra.mxu0 0
        %435 = vmatpush.bf16.xpose.msra.mxu0 0
        %436 = vmatpush.bf16.xpose.msra.mxu0 0
        %437 = vmatpush.bf16.xpose.msra.mxu0 0
        %438 = vmatpush.bf16.xpose.msra.mxu0 0
        %439 = vmatpush.bf16.xpose.msra.mxu0 0
        %440 = vmatpush.bf16.xpose.msra.mxu0 0
        %441 = vmatpush.bf16.xpose.msra.mxu0 %v432
        %442 = vmatmul.bf16.gmra.mxu0 %v429
        %v443 = vpop.f32.mrf.mxu0
        %v444 = vadd.f32 0.0, %v443
        %v445 = vpop.f32.mrf.mxu0
        %v446 = vadd.f32 0.0, %v445
        %447 = vdwg.mxu0
        %vm448 = vcmask 130048
        %v449 = vsel %vm448, %v418, -inf
        %450 = vmax.xlane.f32.xlu0 %v449
        %v451 = vpop.xlane.xlu0 %450
        %v452 = vsel %vm448, %v420, -inf
        %453 = vmax.xlane.f32.xlu0 %v452
        %v454 = vpop.xlane.xlu0 %453
        %v455 = vsel %vm448, %v444, -inf
        %456 = vmax.xlane.f32.xlu0 %v455
        %v457 = vpop.xlane.xlu0 %456
        %v458 = vsel %vm448, %v446, -inf
        %459 = vmax.xlane.f32.xlu0 %v458
        %v460 = vpop.xlane.xlu0 %459
        %v461 = vsub.f32 %v418, %v451
        %v462 = vsub.f32 %v420, %v454
        %v463 = vsub.f32 %v444, %v457
        %v464 = vsub.f32 %v446, %v460
        %v465 = vmul.f32 %v461, 1.442695
        %v466 = vpow.pop %v465
        %v467 = vmul.f32 %v462, 1.442695
        %v468 = vpow.pop %v467
        %v469 = vmul.f32 %v463, 1.442695
        %v470 = vpow.pop %v469
        %v471 = vmul.f32 %v464, 1.442695
        %v472 = vpow.pop %v471
        %v473 = vsel %vm448, %v466, 0.0
        %474 = vadd.xlane.f32.xlu0 %v473
        %v475 = vpop.xlane.xlu0 %474
        %v476 = vsel %vm448, %v468, 0.0
        %477 = vadd.xlane.f32.xlu0 %v476
        %v478 = vpop.xlane.xlu0 %477
        %v479 = vsel %vm448, %v470, 0.0
        %480 = vadd.xlane.f32.xlu0 %v479
        %v481 = vpop.xlane.xlu0 %480
        %v482 = vsel %vm448, %v472, 0.0
        %483 = vadd.xlane.f32.xlu0 %v482
        %v484 = vpop.xlane.xlu0 %483
        %v485 = vrcp.pop %v475
        %v486 = vrcp.pop %v478
        %v487 = vrcp.pop %v481
        %v488 = vrcp.pop %v484
        %v489 = vmul.f32 %v466, %v485
        %v490 = vmul.f32 %v468, %v486
        %v491 = vmul.f32 %v470, %v487
        %v492 = vmul.f32 %v472, %v488
        %v493 = vpack.c.bf16 %v489, %v489
        %v494 = vpack.c.bf16 %v490, %v490
        %v495 = vpack.c.bf16 %v491, %v491
        %v496 = vpack.c.bf16 %v492, %v492
        %v499 = vunpack.c.l.b16 %v493
        %v500 = vunpack.c.l.b16 %v494
        %v501 = vpack.c.b16 %v500, %v499
        %v502 = vunpack.c.l.b16 %v375
        %v503 = vunpack.c.l.b16 %v376
        %v504 = vpack.c.b16 %v503, %v502
        %v507 = vsel %vm448, %v501, 0
        %509 = vmatpush.bf16.msra.mxu0 0
        %510 = vmatpush.bf16.msra.mxu0 0
        %511 = vmatpush.bf16.msra.mxu0 0
        %512 = vmatpush.bf16.msra.mxu0 0
        %513 = vmatpush.bf16.msra.mxu0 0
        %514 = vmatpush.bf16.msra.mxu0 0
        %515 = vmatpush.bf16.msra.mxu0 0
        %516 = vmatpush.bf16.msra.mxu0 %v504
        %517 = vmatmul.bf16.gmra.mxu0 %v507
        %v518 = vpop.f32.mrf.mxu0
        %v519 = vadd.f32 0.0, %v518
        %v520 = vpop.f32.mrf.mxu0
        %v521 = vadd.f32 0.0, %v520
        %522 = vdwg.mxu0
        %v525 = vunpack.c.l.b16 %v495
        %v526 = vunpack.c.l.b16 %v496
        %v527 = vpack.c.b16 %v526, %v525
        %v528 = vunpack.c.l.b16 %v392
        %v529 = vunpack.c.l.b16 %v394
        %v530 = vpack.c.b16 %v529, %v528
        %v533 = vsel %vm448, %v527, 0
        %535 = vmatpush.bf16.msra.mxu0 0
        %536 = vmatpush.bf16.msra.mxu0 0
        %537 = vmatpush.bf16.msra.mxu0 0
        %538 = vmatpush.bf16.msra.mxu0 0
        %539 = vmatpush.bf16.msra.mxu0 0
        %540 = vmatpush.bf16.msra.mxu0 0
        %541 = vmatpush.bf16.msra.mxu0 0
        %542 = vmatpush.bf16.msra.mxu0 %v530
        %543 = vmatmul.bf16.gmra.mxu0 %v533
        %v544 = vpop.f32.mrf.mxu0
        %v545 = vadd.f32 0.0, %v544
        %v546 = vpop.f32.mrf.mxu0
        %v547 = vadd.f32 0.0, %v546
        %548 = vdwg.mxu0
        %v549 = vpack.c.bf16 %v519, %v519
        %v550 = vpack.c.bf16 %v521, %v521
        %v551 = vpack.c.bf16 %v545, %v545
        %v552 = vpack.c.bf16 %v547, %v547
        %v555 = vunpack.c.l.b16 %v549
        %v556 = vunpack.c.l.b16 %v550
        %v557 = vpack.c.b16 %v556, %v555
        %v560 = vunpack.c.l.b16 %v551
        %v561 = vunpack.c.l.b16 %v552
        %v562 = vpack.c.b16 %v561, %v560
        %563 = vrot.lane.b32.xlu0 %v562, 64
        %v564 = vpop.permute.xlu0 %563
        %v567 = vsel %vm401, %v557, %v564
        %v569 = vld [vmem:[#allocation7] sm:$0xff]
        %v570 = vld [vmem:[#allocation7 + $0x8] sm:$0xff]
        %v571 = vld [vmem:[#allocation7 + $0x10] sm:$0xff]
        %v572 = vld [vmem:[#allocation7 + $0x18] sm:$0xff]
        %v573 = vld [vmem:[#allocation7 + $0x20] sm:$0xff]
        %v574 = vld [vmem:[#allocation7 + $0x28] sm:$0xff]
        %v575 = vld [vmem:[#allocation7 + $0x30] sm:$0xff]
        %v576 = vld [vmem:[#allocation7 + $0x38] sm:$0xff]
        %v577 = vld [vmem:[#allocation7 + $0x40] sm:$0xff]
        %v578 = vld [vmem:[#allocation7 + $0x48] sm:$0xff]
        %v579 = vld [vmem:[#allocation7 + $0x50] sm:$0xff]
        %v580 = vld [vmem:[#allocation7 + $0x58] sm:$0xff]
        %v581 = vld [vmem:[#allocation7 + $0x60] sm:$0xff]
        %v582 = vld [vmem:[#allocation7 + $0x68] sm:$0xff]
        %v583 = vld [vmem:[#allocation7 + $0x70] sm:$0xff]
        %v584 = vld [vmem:[#allocation7 + $0x78] sm:$0xff]
        %v585 = vpack.c.bf16 %v570, %v569
        %v586 = vpack.c.bf16 %v572, %v571
        %v587 = vpack.c.bf16 %v574, %v573
        %v588 = vpack.c.bf16 %v576, %v575
        %v589 = vpack.c.bf16 %v578, %v577
        %v590 = vpack.c.bf16 %v580, %v579
        %v591 = vpack.c.bf16 %v582, %v581
        %v592 = vpack.c.bf16 %v584, %v583
        %v593 = vld [vmem:[%s3] sm:$0x1]
        %v595 = vperm.slane %v593, 0
        %597 = vmatpush.bf16.msra.mxu0 %v592
        %598 = vmatpush.bf16.msra.mxu0 %v591
        %599 = vmatpush.bf16.msra.mxu0 %v590
        %600 = vmatpush.bf16.msra.mxu0 %v589
        %601 = vmatpush.bf16.msra.mxu0 %v588
        %602 = vmatpush.bf16.msra.mxu0 %v587
        %603 = vmatpush.bf16.msra.mxu0 %v586
        %604 = vmatpush.bf16.msra.mxu0 %v585
        %605 = vmatmul.bf16.gmra.mxu0 %v567
        %v606 = vpop.f32.mrf.mxu0
        %v607 = vadd.f32 %v595, %v606
        %v608 = vpop.f32.mrf.mxu0
        %v609 = vadd.f32 %v595, %v608
        %610 = vdwg.mxu0
        %611 = vst [vmem:[%s250] sm:$0xff] %v607
        %612 = vst [vmem:[%s250 + $0x8] sm:$0xff] %v609
        %s613 = sand.u32 %s119, 1
        %s614 = scalar_lea.sflag [#allocation4], %s613
        %s615 = sand.u32 %s119, 1
        %s616 = smul.addr %s615, 16
        %s617 = scalar_lea.vmem [#allocation8], %s616
        // Predicated region
        $region49: #{tpu_custom_call.1} parent=35 // pred_check
          %p618 = pneg %p129
        $region50: #{tpu_custom_call.1} parent=35 // pred_check_branch
          %620 = sbr.rel (%p618) target = $region52
        $region51: #{tpu_custom_call.1} parent=35 // pred_region
          %622 = vsyncadd %s614, 0
          %s623 = smul.addr %s22, 2
          %s624 = smul.addr %s623, 8
          %s625 = scalar_lea.hbm %s4, %s624
          %s626 = sshll.u32 %s617, 4
          %s627 = int_to_ptr.vmem [resolvable:$true] %s626
          %s628 = sshll.u32 %s625, 4
          %s629 = int_to_ptr.hbm [resolvable:$true] %s628
          %634 = dma.vmem_to_hbm [thread:$0]  %s627, 256, %s629, %s614, 128, 128, 8
        $region52: #{tpu_custom_call.1} parent=35 // pred_fallthru
          _
      $region36: #{tpu_custom_call.1} parent=5 // pred_fallthru
        _
      %p635 = scmp.le.s32.totalorder 2, %s17
      // Predicated region
      $region53: #{tpu_custom_call.1} parent=5 // pred_check
        %p636 = pneg %p635
      $region54: #{tpu_custom_call.1} parent=5 // pred_check_branch
        %638 = sbr.rel (%p636) target = $region56
      $region55: #{tpu_custom_call.1} parent=5 // pred_region
        %s639 = ssub.s32 %s17, 2
        // Predicated region
        $region57: #{tpu_custom_call.1} parent=55 // pred_check
          %p640 = pneg %p135
        $region58: #{tpu_custom_call.1} parent=55 // pred_check_branch
          %642 = sbr.rel (%p640) target = $region60
        $region59: #{tpu_custom_call.1} parent=55 // pred_region
          %s643 = sand.u32 %s120, 1
          %s644 = scalar_lea.sflag [#allocation4], %s643
          %s645 = sand.u32 %s120, 1
          %s646 = smul.addr %s645, 16
          %s647 = scalar_lea.vmem [#allocation8], %s646
          %649 = dma.done %s644, 256
        $region60: #{tpu_custom_call.1} parent=55 // pred_fallthru
          _
      $region56: #{tpu_custom_call.1} parent=5 // pred_fallthru
        _
    $region6: #{tpu_custom_call.1} parent=1 // loop_footer
      %s21 = sadd.s32 1, %s17
    $region7: #{tpu_custom_call.1} parent=1 // loop_footer_branch
      %16 = sbr.rel target = $region3
    $region8: #{tpu_custom_call.1} parent=1 // loop_exit
      _
    %650 = vsyncpa [#allocation3], 1
    %s651 = scalar_lea.sflag [#allocation3], 1
    %652 = vsyncpa %s651, 1
    %653 = vsyncpa [#allocation6], 1
    %654 = vsyncpa [#allocation4], 1
    %s655 = scalar_lea.sflag [#allocation4], 1
    %656 = vsyncpa %s655, 1

// kernel: tpu_custom_call.1
$region0: #{tpu_custom_call.1}
  #allocation0 [shape = 'u32[]', space=smem, size = 0x4, offset = 0x4, fixed_abs, tag = 'smem constant byte address 0x4 - core index']
  #allocation1 [shape = 'u32[72,128]{1,0:T(1,128)}', space=vmem, size = 0x9000, scoped, tag = 'internal scratch']
  %s0 = inlined_call_operand.hbm [shape: f32[2,16,128], index: 0, kind: input, shape index: {}]
  %s1 = inlined_call_operand.hbm [shape: f32[128,384], index: 1, kind: input, shape index: {}]
  %s2 = inlined_call_operand.hbm [shape: f32[128,128], index: 2, kind: input, shape index: {}]
  %s3 = inlined_call_operand.vmem [shape: f32[1,128], index: 3, kind: input, shape index: {}]
  %s4 = inlined_call_operand.hbm [shape: f32[2,16,128], index: 4, kind: output, shape index: {}]
  %s5 = sld [smem:[#allocation0]]
  $region61: #{tpu_custom_call.1} parent=0
    _
  %s7 = ssub.s32 1, %s5
  %s8 = scalar_select 0, %s7, %s5
  $region1: #{tpu_custom_call.1} parent=0
    #allocation2 [shape = 'u8[16384]{0}', space=vmem, size = 0x4000, scoped, tag = 'input window, operand 0']
    #allocation3 [shape = 's32[2]{0}', space=sflag, size = 0x8, scoped, tag = 'scoped memory for tpu_custom_call.1']
    #allocation4 [shape = 's32[2]{0}', space=sflag, size = 0x8, scoped, tag = 'scoped memory for tpu_custom_call.1']
    #allocation5 [shape = 'u8[196608]{0}', space=vmem, size = 0x30000, scoped, tag = 'input window, operand 1, single buffered']
    #allocation6 [shape = 's32[1]{0}', space=sflag, size = 0x4, scoped, tag = 'scoped memory for tpu_custom_call.1']
    #allocation7 [shape = 'u8[65536]{0}', space=vmem, size = 0x10000, scoped, tag = 'input window, operand 2, single buffered']
    #allocation8 [shape = 'u8[16384]{0}', space=vmem, size = 0x4000, scoped, tag = 'output window, operand 0']
    %9 = vsyncpa [#allocation3], 0
    %s10 = scalar_lea.sflag [#allocation3], 1
    %11 = vsyncpa %s10, 0
    %12 = vsyncpa [#allocation6], 0
    %13 = vsyncpa [#allocation4], 0
    %s14 = scalar_lea.sflag [#allocation4], 1
    %15 = vsyncpa %s14, 0
    loop: start=0, step=1, limit=4
    $region2: #{tpu_custom_call.1} parent=1 // loop_pre_header
      _
    $region3: #{tpu_custom_call.1} parent=1 // loop_header
      %s17 = sphi 0, %s21
      %p18 = scmp.ge.s32.totalorder %s17, 4
      %s27 = sphi 0, %s29
      %s30 = sphi 0, %s27
      %s31 = sphi 0, %s30
      %s47 = sphi 0, %s31
      %s51 = sphi 0, %s51
      %s53 = sphi 0, %s51
      %s54 = sphi 0, %s53
      %s68 = sphi 0, %s54
      %s72 = sphi 0, %s72
      %s74 = sphi 0, %s72
      %s75 = sphi 0, %s74
      %s89 = sphi 0, %s75
      %s93 = sphi 0, %s93
      %s95 = sphi 0, %s93
      %s96 = sphi 0, %s95
      %s110 = sphi 0, %s96
      %s116 = sphi 0, %s118
      %s119 = sphi 0, %s116
      %s120 = sphi 0, %s119
      %s136 = sphi 0, %s120
    $region4: #{tpu_custom_call.1} parent=1 // loop_header_branch
      %20 = sbr.rel (%p18) target = $region8
    $region5: #{tpu_custom_call.1} parent=1 // loop_body
      %s22 = ssub.s32 %s17, 1
      %s23 = ssub.s32 %s17, 2
      %s24 = sadd.s32 %s17, 1
      %s25 = ssub.s32 %s17, %s24
      %p26 = scmp.eq.s32.totalorder %s25, 0
      %s28 = sadd.s32 %s27, 1
      %s29 = scalar_select %p26, %s27, %s28
      %p32 = pneg %p26
      %p33 = scmp.eq.s32.totalorder %s17, 1
      %p34 = por %p32, %p33
      %p35 = scmp.ne.s32.totalorder %s27, %s30
      %p36 = scmp.eq.s32.totalorder %s17, 0
      %p37 = por %p35, %p36
      %p38 = scmp.ne.s32.totalorder %s27, %s30
      %p39 = scmp.eq.s32.totalorder %s22, 1
      %p40 = por %p38, %p39
      %p41 = scmp.ne.s32.totalorder %s30, %s31
      %p42 = scmp.eq.s32.totalorder %s22, 0
      %p43 = por %p41, %p42
      %p44 = scmp.ne.s32.totalorder %s30, %s31
      %p45 = scmp.eq.s32.totalorder %s23, 1
      %p46 = por %p44, %p45
      %p48 = scmp.ne.s32.totalorder %s31, %s47
      %p49 = scmp.eq.s32.totalorder %s23, 0
      %p50 = por %p48, %p49
      %s52 = sadd.s32 %s51, 1
      %p55 = scmp.eq.s32.totalorder %s17, 1
      %p56 = scmp.ne.s32.totalorder %s51, %s53
      %p57 = scmp.eq.s32.totalorder %s17, 0
      %p58 = por %p56, %p57
      %p59 = scmp.ne.s32.totalorder %s51, %s53
      %p60 = scmp.eq.s32.totalorder %s22, 1
      %p61 = por %p59, %p60
      %p62 = scmp.ne.s32.totalorder %s53, %s54
      %p63 = scmp.eq.s32.totalorder %s22, 0
      %p64 = por %p62, %p63
      %p65 = scmp.ne.s32.totalorder %s53, %s54
      %p66 = scmp.eq.s32.totalorder %s23, 1
      %p67 = por %p65, %p66
      %p69 = scmp.ne.s32.totalorder %s54, %s68
      %p70 = scmp.eq.s32.totalorder %s23, 0
      %p71 = por %p69, %p70
      %s73 = sadd.s32 %s72, 1
      %p76 = scmp.eq.s32.totalorder %s17, 1
      %p77 = scmp.ne.s32.totalorder %s72, %s74
      %p78 = scmp.eq.s32.totalorder %s17, 0
      %p79 = por %p77, %p78
      %p80 = scmp.ne.s32.totalorder %s72, %s74
      %p81 = scmp.eq.s32.totalorder %s22, 1
      %p82 = por %p80, %p81
      %p83 = scmp.ne.s32.totalorder %s74, %s75
      %p84 = scmp.eq.s32.totalorder %s22, 0
      %p85 = por %p83, %p84
      %p86 = scmp.ne.s32.totalorder %s74, %s75
      %p87 = scmp.eq.s32.totalorder %s23, 1
      %p88 = por %p86, %p87
      %p90 = scmp.ne.s32.totalorder %s75, %s89
      %p91 = scmp.eq.s32.totalorder %s23, 0
      %p92 = por %p90, %p91
      %s94 = sadd.s32 %s93, 1
      %p97 = scmp.eq.s32.totalorder %s17, 1
      %p98 = scmp.ne.s32.totalorder %s93, %s95
      %p99 = scmp.eq.s32.totalorder %s17, 0
      %p100 = por %p98, %p99
      %p101 = scmp.ne.s32.totalorder %s93, %s95
      %p102 = scmp.eq.s32.totalorder %s22, 1
      %p103 = por %p101, %p102
      %p104 = scmp.ne.s32.totalorder %s95, %s96
      %p105 = scmp.eq.s32.totalorder %s22, 0
      %p106 = por %p104, %p105
      %p107 = scmp.ne.s32.totalorder %s95, %s96
      %p108 = scmp.eq.s32.totalorder %s23, 1
      %p109 = por %p107, %p108
      %p111 = scmp.ne.s32.totalorder %s96, %s110
      %p112 = scmp.eq.s32.totalorder %s23, 0
      %p113 = por %p111, %p112
      %s114 = ssub.s32 %s17, %s24
      %p115 = scmp.eq.s32.totalorder %s114, 0
      %s117 = sadd.s32 %s116, 1
      %s118 = scalar_select %p115, %s116, %s117
      %p121 = pneg %p115
      %p122 = scmp.eq.s32.totalorder %s17, 1
      %p123 = por %p121, %p122
      %p124 = scmp.ne.s32.totalorder %s116, %s119
      %p125 = scmp.eq.s32.totalorder %s17, 0
      %p126 = por %p124, %p125
      %p127 = scmp.ne.s32.totalorder %s116, %s119
      %p128 = scmp.eq.s32.totalorder %s22, 1
      %p129 = por %p127, %p128
      %p130 = scmp.ne.s32.totalorder %s119, %s120
      %p131 = scmp.eq.s32.totalorder %s22, 0
      %p132 = por %p130, %p131
      %p133 = scmp.ne.s32.totalorder %s119, %s120
      %p134 = scmp.eq.s32.totalorder %s23, 1
      %p135 = por %p133, %p134
      %p137 = scmp.ne.s32.totalorder %s120, %s136
      %p138 = scmp.eq.s32.totalorder %s23, 0
      %p139 = por %p137, %p138
      %p140 = scmp.le.s32.totalorder 1, %s17
      %p141 = scmp.lt.s32.totalorder %s17, 3
      %p142 = pnand %p140, %p141
      %p143 = pneg %p142
      // Predicated region
      $region9: #{tpu_custom_call.1} parent=5 // pred_check
        _
      $region10: #{tpu_custom_call.1} parent=5 // pred_check_branch
        %145 = sbr.rel (%p142) target = $region12
      $region11: #{tpu_custom_call.1} parent=5 // pred_region
        %s146 = ssub.s32 %s17, 1
        // Predicated region
        $region13: #{tpu_custom_call.1} parent=11 // pred_check
          %p147 = pneg %p64
        $region14: #{tpu_custom_call.1} parent=11 // pred_check_branch
          %149 = sbr.rel (%p147) target = $region16
        $region15: #{tpu_custom_call.1} parent=11 // pred_region
          %151 = vsyncadd [#allocation6], 0
          %s152 = sshll.u32 %s1, 4
          %s153 = int_to_ptr.hbm [resolvable:$true] %s152
          %s154 = sshll.u32 [#allocation5], 4
          %s155 = int_to_ptr.vmem [resolvable:$true] %s154
          %160 = dma.hbm_to_vmem [thread:$0]  %s153, 6144, %s155, [#allocation6], 384, 384, 24
        $region16: #{tpu_custom_call.1} parent=11 // pred_fallthru
          _
        // Predicated region
        $region17: #{tpu_custom_call.1} parent=11 // pred_check
          %p161 = pneg %p85
        $region18: #{tpu_custom_call.1} parent=11 // pred_check_branch
          %163 = sbr.rel (%p161) target = $region20
        $region19: #{tpu_custom_call.1} parent=11 // pred_region
          %165 = vsyncadd [#allocation6], 0
          %s166 = sshll.u32 %s2, 4
          %s167 = int_to_ptr.hbm [resolvable:$true] %s166
          %s168 = sshll.u32 [#allocation7], 4
          %s169 = int_to_ptr.vmem [resolvable:$true] %s168
          %174 = dma.hbm_to_vmem [thread:$0]  %s167, 2048, %s169, [#allocation6], 128, 128, 8
        $region20: #{tpu_custom_call.1} parent=11 // pred_fallthru
          _
        // Predicated region
        $region21: #{tpu_custom_call.1} parent=11 // pred_check
          %p175 = pneg %p106
        $region22: #{tpu_custom_call.1} parent=11 // pred_check_branch
          %177 = sbr.rel (%p175) target = $region24
        $region23: #{tpu_custom_call.1} parent=11 // pred_region
          _
        $region24: #{tpu_custom_call.1} parent=11 // pred_fallthru
          _
      $region12: #{tpu_custom_call.1} parent=5 // pred_fallthru
        _
      %p178 = scmp.lt.s32.totalorder %s17, 2
      // Predicated region
      $region25: #{tpu_custom_call.1} parent=5 // pred_check
        %p179 = pneg %p178
      $region26: #{tpu_custom_call.1} parent=5 // pred_check_branch
        %181 = sbr.rel (%p179) target = $region28
      $region27: #{tpu_custom_call.1} parent=5 // pred_region
        // Predicated region
        $region29: #{tpu_custom_call.1} parent=27 // pred_check
          %p182 = pneg %p37
        $region30: #{tpu_custom_call.1} parent=27 // pred_check_branch
          %184 = sbr.rel (%p182) target = $region32
        $region31: #{tpu_custom_call.1} parent=27 // pred_region
          %s185 = sand.u32 %s27, 1
          %s186 = scalar_lea.sflag [#allocation3], %s185
          %s187 = sand.u32 %s27, 1
          %s188 = smul.addr %s187, 16
          %s189 = scalar_lea.vmem [#allocation2], %s188
          %191 = vsyncadd %s186, 0
          %s192 = smul.addr %s17, 2
          %s193 = smul.addr %s192, 8
          %s194 = scalar_lea.hbm %s0, %s193
          %s195 = sshll.u32 %s194, 4
          %s196 = int_to_ptr.hbm [resolvable:$true] %s195
          %s197 = sshll.u32 %s189, 4
          %s198 = int_to_ptr.vmem [resolvable:$true] %s197
          %203 = dma.hbm_to_vmem [thread:$0]  %s196, 256, %s198, %s186, 128, 128, 8
        $region32: #{tpu_custom_call.1} parent=27 // pred_fallthru
          _
      $region28: #{tpu_custom_call.1} parent=5 // pred_fallthru
        _
      %p204 = scmp.le.s32.totalorder 1, %s17
      %p205 = scmp.lt.s32.totalorder %s17, 3
      %p206 = pnand %p204, %p205
      %p207 = pneg %p206
      // Predicated region
      $region33: #{tpu_custom_call.1} parent=5 // pred_check
        _
      $region34: #{tpu_custom_call.1} parent=5 // pred_check_branch
        %209 = sbr.rel (%p206) target = $region36
      $region35: #{tpu_custom_call.1} parent=5 // pred_region
        %s210 = ssub.s32 %s17, 1
        %s211 = sand.u32 %s30, 1
        %s212 = scalar_lea.sflag [#allocation3], %s211
        %s213 = sand.u32 %s30, 1
        %s214 = smul.addr %s213, 16
        %s215 = scalar_lea.vmem [#allocation2], %s214
        // Predicated region
        $region37: #{tpu_custom_call.1} parent=35 // pred_check
          %p216 = pneg %p43
        $region38: #{tpu_custom_call.1} parent=35 // pred_check_branch
          %218 = sbr.rel (%p216) target = $region40
        $region39: #{tpu_custom_call.1} parent=35 // pred_region
          %220 = dma.done %s212, 256
        $region40: #{tpu_custom_call.1} parent=35 // pred_fallthru
          _
        // Predicated region
        $region41: #{tpu_custom_call.1} parent=35 // pred_check
          %p221 = pneg %p64
        $region42: #{tpu_custom_call.1} parent=35 // pred_check_branch
          %223 = sbr.rel (%p221) target = $region44
        $region43: #{tpu_custom_call.1} parent=35 // pred_region
          %225 = dma.done [#allocation6], 6144
        $region44: #{tpu_custom_call.1} parent=35 // pred_fallthru
          _
        // Predicated region
        $region45: #{tpu_custom_call.1} parent=35 // pred_check
          %p226 = pneg %p85
        $region46: #{tpu_custom_call.1} parent=35 // pred_check_branch
          %228 = sbr.rel (%p226) target = $region48
        $region47: #{tpu_custom_call.1} parent=35 // pred_region
          %230 = dma.done [#allocation6], 2048
        $region48: #{tpu_custom_call.1} parent=35 // pred_fallthru
          _
        %s231 = sand.u32 %s30, 1
        %s232 = scalar_lea.sflag [#allocation3], %s231
        %s233 = sand.u32 %s30, 1
        %s234 = smul.addr %s233, 16
        %s235 = scalar_lea.vmem [#allocation2], %s234
        %p236 = pneg %p43
        %p237 = pneg %p40
        %p238 = pneg %p64
        %p239 = pneg %p61
        %p240 = pneg %p85
        %p241 = pneg %p82
        %p242 = pneg %p106
        %p243 = pneg %p103
        %p244 = pneg %p132
        %p245 = pneg %p129
        %s246 = sand.u32 %s119, 1
        %s247 = scalar_lea.sflag [#allocation4], %s246
        %s248 = sand.u32 %s119, 1
        %s249 = smul.addr %s248, 16
        %s250 = scalar_lea.vmem [#allocation8], %s249
        %v252 = vld [vmem:[%s215] sm:$0xff]
        %v253 = vld [vmem:[%s215 + $0x8] sm:$0xff]
        %v254 = vpack.c.bf16 %v253, %v252
        %v255 = vld [vmem:[#allocation5] sm:$0xff]
        %v256 = vld [vmem:[#allocation5 + $0x8] sm:$0xff]
        %v257 = vld [vmem:[#allocation5 + $0x10] sm:$0xff]
        %v258 = vld [vmem:[#allocation5 + $0x18] sm:$0xff]
        %v259 = vld [vmem:[#allocation5 + $0x20] sm:$0xff]
        %v260 = vld [vmem:[#allocation5 + $0x28] sm:$0xff]
        %v261 = vld [vmem:[#allocation5 + $0x30] sm:$0xff]
        %v262 = vld [vmem:[#allocation5 + $0x38] sm:$0xff]
        %v263 = vld [vmem:[#allocation5 + $0x40] sm:$0xff]
        %v264 = vld [vmem:[#allocation5 + $0x48] sm:$0xff]
        %v265 = vld [vmem:[#allocation5 + $0x50] sm:$0xff]
        %v266 = vld [vmem:[#allocation5 + $0x58] sm:$0xff]
        %v267 = vld [vmem:[#allocation5 + $0x60] sm:$0xff]
        %v268 = vld [vmem:[#allocation5 + $0x68] sm:$0xff]
        %v269 = vld [vmem:[#allocation5 + $0x70] sm:$0xff]
        %v270 = vld [vmem:[#allocation5 + $0x78] sm:$0xff]
        %v271 = vld [vmem:[#allocation5 + $0x80] sm:$0xff]
        %v272 = vld [vmem:[#allocation5 + $0x88] sm:$0xff]
        %v273 = vld [vmem:[#allocation5 + $0x90] sm:$0xff]
        %v274 = vld [vmem:[#allocation5 + $0x98] sm:$0xff]
        %v275 = vld [vmem:[#allocation5 + $0xa0] sm:$0xff]
        %v276 = vld [vmem:[#allocation5 + $0xa8] sm:$0xff]
        %v277 = vld [vmem:[#allocation5 + $0xb0] sm:$0xff]
        %v278 = vld [vmem:[#allocation5 + $0xb8] sm:$0xff]
        %v279 = vld [vmem:[#allocation5 + $0xc0] sm:$0xff]
        %v280 = vld [vmem:[#allocation5 + $0xc8] sm:$0xff]
        %v281 = vld [vmem:[#allocation5 + $0xd0] sm:$0xff]
        %v282 = vld [vmem:[#allocation5 + $0xd8] sm:$0xff]
        %v283 = vld [vmem:[#allocation5 + $0xe0] sm:$0xff]
        %v284 = vld [vmem:[#allocation5 + $0xe8] sm:$0xff]
        %v285 = vld [vmem:[#allocation5 + $0xf0] sm:$0xff]
        %v286 = vld [vmem:[#allocation5 + $0xf8] sm:$0xff]
        %v287 = vld [vmem:[#allocation5 + $0x100] sm:$0xff]
        %v288 = vld [vmem:[#allocation5 + $0x108] sm:$0xff]
        %v289 = vld [vmem:[#allocation5 + $0x110] sm:$0xff]
        %v290 = vld [vmem:[#allocation5 + $0x118] sm:$0xff]
        %v291 = vld [vmem:[#allocation5 + $0x120] sm:$0xff]
        %v292 = vld [vmem:[#allocation5 + $0x128] sm:$0xff]
        %v293 = vld [vmem:[#allocation5 + $0x130] sm:$0xff]
        %v294 = vld [vmem:[#allocation5 + $0x138] sm:$0xff]
        %v295 = vld [vmem:[#allocation5 + $0x140] sm:$0xff]
        %v296 = vld [vmem:[#allocation5 + $0x148] sm:$0xff]
        %v297 = vld [vmem:[#allocation5 + $0x150] sm:$0xff]
        %v298 = vld [vmem:[#allocation5 + $0x158] sm:$0xff]
        %v299 = vld [vmem:[#allocation5 + $0x160] sm:$0xff]
        %v300 = vld [vmem:[#allocation5 + $0x168] sm:$0xff]
        %v301 = vld [vmem:[#allocation5 + $0x170] sm:$0xff]
        %v302 = vld [vmem:[#allocation5 + $0x178] sm:$0xff]
        %v303 = vpack.c.bf16 %v258, %v255
        %v304 = vpack.c.bf16 %v259, %v256
        %v305 = vpack.c.bf16 %v260, %v257
        %v306 = vpack.c.bf16 %v264, %v261
        %v307 = vpack.c.bf16 %v265, %v262
        %v308 = vpack.c.bf16 %v266, %v263
        %v309 = vpack.c.bf16 %v270, %v267
        %v310 = vpack.c.bf16 %v271, %v268
        %v311 = vpack.c.bf16 %v272, %v269
        %v312 = vpack.c.bf16 %v276, %v273
        %v313 = vpack.c.bf16 %v277, %v274
        %v314 = vpack.c.bf16 %v278, %v275
        %v315 = vpack.c.bf16 %v282, %v279
        %v316 = vpack.c.bf16 %v283, %v280
        %v317 = vpack.c.bf16 %v284, %v281
        %v318 = vpack.c.bf16 %v288, %v285
        %v319 = vpack.c.bf16 %v289, %v286
        %v320 = vpack.c.bf16 %v290, %v287
        %v321 = vpack.c.bf16 %v294, %v291
        %v322 = vpack.c.bf16 %v295, %v292
        %v323 = vpack.c.bf16 %v296, %v293
        %v324 = vpack.c.bf16 %v300, %v297
        %v325 = vpack.c.bf16 %v301, %v298
        %v326 = vpack.c.bf16 %v302, %v299
        %327 = vmatpush.bf16.msra.mxu0 %v324
        %328 = vmatpush.bf16.msra.mxu0 %v321
        %329 = vmatpush.bf16.msra.mxu0 %v318
        %330 = vmatpush.bf16.msra.mxu0 %v315
        %331 = vmatpush.bf16.msra.mxu0 %v312
        %332 = vmatpush.bf16.msra.mxu0 %v309
        %333 = vmatpush.bf16.msra.mxu0 %v306
        %334 = vmatpush.bf16.msra.mxu0 %v303
        %335 = vmatmul.bf16.gmra.mxu0 %v254
        %v336 = vpop.f32.mrf.mxu0
        %v337 = vadd.f32 0.0, %v336
        %v338 = vpop.f32.mrf.mxu0
        %v339 = vadd.f32 0.0, %v338
        %340 = vdwg.mxu0
        %341 = vmatpush.bf16.msra.mxu0 %v325
        %342 = vmatpush.bf16.msra.mxu0 %v322
        %343 = vmatpush.bf16.msra.mxu0 %v319
        %344 = vmatpush.bf16.msra.mxu0 %v316
        %345 = vmatpush.bf16.msra.mxu0 %v313
        %346 = vmatpush.bf16.msra.mxu0 %v310
        %347 = vmatpush.bf16.msra.mxu0 %v307
        %348 = vmatpush.bf16.msra.mxu0 %v304
        %349 = vmatmul.bf16.gmra.mxu0 %v254
        %v350 = vpop.f32.mrf.mxu0
        %v351 = vadd.f32 0.0, %v350
        %v352 = vpop.f32.mrf.mxu0
        %v353 = vadd.f32 0.0, %v352
        %354 = vdwg.mxu0
        %355 = vmatpush.bf16.msra.mxu0 %v326
        %356 = vmatpush.bf16.msra.mxu0 %v323
        %357 = vmatpush.bf16.msra.mxu0 %v320
        %358 = vmatpush.bf16.msra.mxu0 %v317
        %359 = vmatpush.bf16.msra.mxu0 %v314
        %360 = vmatpush.bf16.msra.mxu0 %v311
        %361 = vmatpush.bf16.msra.mxu0 %v308
        %362 = vmatpush.bf16.msra.mxu0 %v305
        %363 = vmatmul.bf16.gmra.mxu0 %v254
        %v364 = vpop.f32.mrf.mxu0
        %v365 = vadd.f32 0.0, %v364
        %v366 = vpop.f32.mrf.mxu0
        %v367 = vadd.f32 0.0, %v366
        %368 = vdwg.mxu0
        %v369 = vmul.f32 %v337, 0.125
        %v370 = vmul.f32 %v339, 0.125
        %v371 = vpack.c.bf16 %v369, %v369
        %v372 = vpack.c.bf16 %v370, %v370
        %v373 = vpack.c.bf16 %v351, %v351
        %v374 = vpack.c.bf16 %v353, %v353
        %v375 = vpack.c.bf16 %v365, %v365
        %v376 = vpack.c.bf16 %v367, %v367
        %379 = vrot.lane.b32.xlu0 %v371, 64
        %v380 = vpop.permute.xlu0 %379
        %381 = vrot.lane.b32.xlu0 %v372, 64
        %v382 = vpop.permute.xlu0 %381
        %385 = vrot.lane.b32.xlu0 %v373, 64
        %v386 = vpop.permute.xlu0 %385
        %387 = vrot.lane.b32.xlu0 %v374, 64
        %v388 = vpop.permute.xlu0 %387
        %391 = vrot.lane.b32.xlu0 %v375, 64
        %v392 = vpop.permute.xlu0 %391
        %393 = vrot.lane.b32.xlu0 %v376, 64
        %v394 = vpop.permute.xlu0 %393
        %v395 = vunpack.c.l.b16 %v371
        %v396 = vunpack.c.l.b16 %v372
        %v397 = vpack.c.b16 %v396, %v395
        %v398 = vunpack.c.l.b16 %v373
        %v399 = vunpack.c.l.b16 %v374
        %v400 = vpack.c.b16 %v399, %v398
        %vm401 = vcmask 523264
        %v403 = vsel %vm401, %v397, 0
        %v406 = vsel %vm401, %v400, 0
        %408 = vmatpush.bf16.xpose.msra.mxu0 0
        %409 = vmatpush.bf16.xpose.msra.mxu0 0
        %410 = vmatpush.bf16.xpose.msra.mxu0 0
        %411 = vmatpush.bf16.xpose.msra.mxu0 0
        %412 = vmatpush.bf16.xpose.msra.mxu0 0
        %413 = vmatpush.bf16.xpose.msra.mxu0 0
        %414 = vmatpush.bf16.xpose.msra.mxu0 0
        %415 = vmatpush.bf16.xpose.msra.mxu0 %v406
        %416 = vmatmul.bf16.gmra.mxu0 %v403
        %v417 = vpop.f32.mrf.mxu0
        %v418 = vadd.f32 0.0, %v417
        %v419 = vpop.f32.mrf.mxu0
        %v420 = vadd.f32 0.0, %v419
        %421 = vdwg.mxu0
        %v422 = vunpack.c.l.b16 %v380
        %v423 = vunpack.c.l.b16 %v382
        %v424 = vpack.c.b16 %v423, %v422
        %v425 = vunpack.c.l.b16 %v386
        %v426 = vunpack.c.l.b16 %v388
        %v427 = vpack.c.b16 %v426, %v425
        %v429 = vsel %vm401, %v424, 0
        %v432 = vsel %vm401, %v427, 0
        %434 = vmatpush.bf16.xpose.msra.mxu0 0
        %435 = vmatpush.bf16.xpose.msra.mxu0 0
        %436 = vmatpush.bf16.xpose.msra.mxu0 0
        %437 = vmatpush.bf16.xpose.msra.mxu0 0
        %438 = vmatpush.bf16.xpose.msra.mxu0 0
        %439 = vmatpush.bf16.xpose.msra.mxu0 0
        %440 = vmatpush.bf16.xpose.msra.mxu0 0
        %441 = vmatpush.bf16.xpose.msra.mxu0 %v432
        %442 = vmatmul.bf16.gmra.mxu0 %v429
        %v443 = vpop.f32.mrf.mxu0
        %v444 = vadd.f32 0.0, %v443
        %v445 = vpop.f32.mrf.mxu0
        %v446 = vadd.f32 0.0, %v445
        %447 = vdwg.mxu0
        %vm448 = vcmask 130048
        %v449 = vsel %vm448, %v418, -inf
        %450 = vmax.xlane.f32.xlu0 %v449
        %v451 = vpop.xlane.xlu0 %450
        %v452 = vsel %vm448, %v420, -inf
        %453 = vmax.xlane.f32.xlu0 %v452
        %v454 = vpop.xlane.xlu0 %453
        %v455 = vsel %vm448, %v444, -inf
        %456 = vmax.xlane.f32.xlu0 %v455
        %v457 = vpop.xlane.xlu0 %456
        %v458 = vsel %vm448, %v446, -inf
        %459 = vmax.xlane.f32.xlu0 %v458
        %v460 = vpop.xlane.xlu0 %459
        %v461 = vsub.f32 %v418, %v451
        %v462 = vsub.f32 %v420, %v454
        %v463 = vsub.f32 %v444, %v457
        %v464 = vsub.f32 %v446, %v460
        %v465 = vmul.f32 %v461, 1.442695
        %v466 = vpow.pop %v465
        %v467 = vmul.f32 %v462, 1.442695
        %v468 = vpow.pop %v467
        %v469 = vmul.f32 %v463, 1.442695
        %v470 = vpow.pop %v469
        %v471 = vmul.f32 %v464, 1.442695
        %v472 = vpow.pop %v471
        %v473 = vsel %vm448, %v466, 0.0
        %474 = vadd.xlane.f32.xlu0 %v473
        %v475 = vpop.xlane.xlu0 %474
        %v476 = vsel %vm448, %v468, 0.0
        %477 = vadd.xlane.f32.xlu0 %v476
        %v478 = vpop.xlane.xlu0 %477
        %v479 = vsel %vm448, %v470, 0.0
        %480 = vadd.xlane.f32.xlu0 %v479
        %v481 = vpop.xlane.xlu0 %480
        %v482 = vsel %vm448, %v472, 0.0
        %483 = vadd.xlane.f32.xlu0 %v482
        %v484 = vpop.xlane.xlu0 %483
        %v485 = vrcp.pop %v475
        %v486 = vrcp.pop %v478
        %v487 = vrcp.pop %v481
        %v488 = vrcp.pop %v484
        %v489 = vmul.f32 %v466, %v485
        %v490 = vmul.f32 %v468, %v486
        %v491 = vmul.f32 %v470, %v487
        %v492 = vmul.f32 %v472, %v488
        %v493 = vpack.c.bf16 %v489, %v489
        %v494 = vpack.c.bf16 %v490, %v490
        %v495 = vpack.c.bf16 %v491, %v491
        %v496 = vpack.c.bf16 %v492, %v492
        %v499 = vunpack.c.l.b16 %v493
        %v500 = vunpack.c.l.b16 %v494
        %v501 = vpack.c.b16 %v500, %v499
        %v502 = vunpack.c.l.b16 %v375
        %v503 = vunpack.c.l.b16 %v376
        %v504 = vpack.c.b16 %v503, %v502
        %v507 = vsel %vm448, %v501, 0
        %509 = vmatpush.bf16.msra.mxu0 0
        %510 = vmatpush.bf16.msra.mxu0 0
        %511 = vmatpush.bf16.msra.mxu0 0
        %512 = vmatpush.bf16.msra.mxu0 0
        %513 = vmatpush.bf16.msra.mxu0 0
        %514 = vmatpush.bf16.msra.mxu0 0
        %515 = vmatpush.bf16.msra.mxu0 0
        %516 = vmatpush.bf16.msra.mxu0 %v504
        %517 = vmatmul.bf16.gmra.mxu0 %v507
        %v518 = vpop.f32.mrf.mxu0
        %v519 = vadd.f32 0.0, %v518
        %v520 = vpop.f32.mrf.mxu0
        %v521 = vadd.f32 0.0, %v520
        %522 = vdwg.mxu0
        %v525 = vunpack.c.l.b16 %v495
        %v526 = vunpack.c.l.b16 %v496
        %v527 = vpack.c.b16 %v526, %v525
        %v528 = vunpack.c.l.b16 %v392
        %v529 = vunpack.c.l.b16 %v394
        %v530 = vpack.c.b16 %v529, %v528
        %v533 = vsel %vm448, %v527, 0
        %535 = vmatpush.bf16.msra.mxu0 0
        %536 = vmatpush.bf16.msra.mxu0 0
        %537 = vmatpush.bf16.msra.mxu0 0
        %538 = vmatpush.bf16.msra.mxu0 0
        %539 = vmatpush.bf16.msra.mxu0 0
        %540 = vmatpush.bf16.msra.mxu0 0
        %541 = vmatpush.bf16.msra.mxu0 0
        %542 = vmatpush.bf16.msra.mxu0 %v530
        %543 = vmatmul.bf16.gmra.mxu0 %v533
        %v544 = vpop.f32.mrf.mxu0
        %v545 = vadd.f32 0.0, %v544
        %v546 = vpop.f32.mrf.mxu0
        %v547 = vadd.f32 0.0, %v546
        %548 = vdwg.mxu0
        %v549 = vpack.c.bf16 %v519, %v519
        %v550 = vpack.c.bf16 %v521, %v521
        %v551 = vpack.c.bf16 %v545, %v545
        %v552 = vpack.c.bf16 %v547, %v547
        %v555 = vunpack.c.l.b16 %v549
        %v556 = vunpack.c.l.b16 %v550
        %v557 = vpack.c.b16 %v556, %v555
        %v560 = vunpack.c.l.b16 %v551
        %v561 = vunpack.c.l.b16 %v552
        %v562 = vpack.c.b16 %v561, %v560
        %563 = vrot.lane.b32.xlu0 %v562, 64
        %v564 = vpop.permute.xlu0 %563
        %v567 = vsel %vm401, %v557, %v564
        %v569 = vld [vmem:[#allocation7] sm:$0xff]
        %v570 = vld [vmem:[#allocation7 + $0x8] sm:$0xff]
        %v571 = vld [vmem:[#allocation7 + $0x10] sm:$0xff]
        %v572 = vld [vmem:[#allocation7 + $0x18] sm:$0xff]
        %v573 = vld [vmem:[#allocation7 + $0x20] sm:$0xff]
        %v574 = vld [vmem:[#allocation7 + $0x28] sm:$0xff]
        %v575 = vld [vmem:[#allocation7 + $0x30] sm:$0xff]
        %v576 = vld [vmem:[#allocation7 + $0x38] sm:$0xff]
        %v577 = vld [vmem:[#allocation7 + $0x40] sm:$0xff]
        %v578 = vld [vmem:[#allocation7 + $0x48] sm:$0xff]
        %v579 = vld [vmem:[#allocation7 + $0x50] sm:$0xff]
        %v580 = vld [vmem:[#allocation7 + $0x58] sm:$0xff]
        %v581 = vld [vmem:[#allocation7 + $0x60] sm:$0xff]
        %v582 = vld [vmem:[#allocation7 + $0x68] sm:$0xff]
        %v583 = vld [vmem:[#allocation7 + $0x70] sm:$0xff]
        %v584 = vld [vmem:[#allocation7 + $0x78] sm:$0xff]
        %v585 = vpack.c.bf16 %v570, %v569
        %v586 = vpack.c.bf16 %v572, %v571
        %v587 = vpack.c.bf16 %v574, %v573
        %v588 = vpack.c.bf16 %v576, %v575
        %v589 = vpack.c.bf16 %v578, %v577
        %v590 = vpack.c.bf16 %v580, %v579
        %v591 = vpack.c.bf16 %v582, %v581
        %v592 = vpack.c.bf16 %v584, %v583
        %v593 = vld [vmem:[%s3] sm:$0x1]
        %v595 = vperm.slane %v593, 0
        %597 = vmatpush.bf16.msra.mxu0 %v592
        %598 = vmatpush.bf16.msra.mxu0 %v591
        %599 = vmatpush.bf16.msra.mxu0 %v590
        %600 = vmatpush.bf16.msra.mxu0 %v589
        %601 = vmatpush.bf16.msra.mxu0 %v588
        %602 = vmatpush.bf16.msra.mxu0 %v587
        %603 = vmatpush.bf16.msra.mxu0 %v586
        %604 = vmatpush.bf16.msra.mxu0 %v585
        %605 = vmatmul.bf16.gmra.mxu0 %v567
        %v606 = vpop.f32.mrf.mxu0
        %v607 = vadd.f32 %v595, %v606
        %v608 = vpop.f32.mrf.mxu0
        %v609 = vadd.f32 %v595, %v608
        %610 = vdwg.mxu0
        %611 = vst [vmem:[%s250] sm:$0xff] %v607
        %612 = vst [vmem:[%s250 + $0x8] sm:$0xff] %v609
        %s613 = sand.u32 %s119, 1
        %s614 = scalar_lea.sflag [#allocation4], %s613
        %s615 = sand.u32 %s119, 1
        %s616 = smul.addr %s615, 16
        %s617 = scalar_lea.vmem [#allocation8], %s616
        // Predicated region
        $region49: #{tpu_custom_call.1} parent=35 // pred_check
          %p618 = pneg %p129
        $region50: #{tpu_custom_call.1} parent=35 // pred_check_branch
          %620 = sbr.rel (%p618) target = $region52
        $region51: #{tpu_custom_call.1} parent=35 // pred_region
          %622 = vsyncadd %s614, 0
          %s623 = smul.addr %s22, 2
          %s624 = smul.addr %s623, 8
          %s625 = scalar_lea.hbm %s4, %s624
          %s626 = sshll.u32 %s617, 4
          %s627 = int_to_ptr.vmem [resolvable:$true] %s626
          %s628 = sshll.u32 %s625, 4
          %s629 = int_to_ptr.hbm [resolvable:$true] %s628
          %634 = dma.vmem_to_hbm [thread:$0]  %s627, 256, %s629, %s614, 128, 128, 8
        $region52: #{tpu_custom_call.1} parent=35 // pred_fallthru
          _
      $region36: #{tpu_custom_call.1} parent=5 // pred_fallthru
        _
      %p635 = scmp.le.s32.totalorder 2, %s17
      // Predicated region
      $region53: #{tpu_custom_call.1} parent=5 // pred_check
        %p636 = pneg %p635
      $region54: #{tpu_custom_call.1} parent=5 // pred_check_branch
        %638 = sbr.rel (%p636) target = $region56
      $region55: #{tpu_custom_call.1} parent=5 // pred_region
        %s639 = ssub.s32 %s17, 2
        // Predicated region
        $region57: #{tpu_custom_call.1} parent=55 // pred_check
          %p640 = pneg %p135
        $region58: #{tpu_custom_call.1} parent=55 // pred_check_branch
          %642 = sbr.rel (%p640) target = $region60
        $region59: #{tpu_custom_call.1} parent=55 // pred_region
          %s643 = sand.u32 %s120, 1
          %s644 = scalar_lea.sflag [#allocation4], %s643
          %s645 = sand.u32 %s120, 1
          %s646 = smul.addr %s645, 16
          %s647 = scalar_lea.vmem [#allocation8], %s646
          %649 = dma.done %s644, 256
        $region60: #{tpu_custom_call.1} parent=55 // pred_fallthru
          _
      $region56: #{tpu_custom_call.1} parent=5 // pred_fallthru
        _
    $region6: #{tpu_custom_call.1} parent=1 // loop_footer
      %s21 = sadd.s32 1, %s17
    $region7: #{tpu_custom_call.1} parent=1 // loop_footer_branch
      %16 = sbr.rel target = $region3
    $region8: #{tpu_custom_call.1} parent=1 // loop_exit
      _
    %650 = vsyncpa [#allocation3], 1
    %s651 = scalar_lea.sflag [#allocation3], 1
    %652 = vsyncpa %s651, 1
    %653 = vsyncpa [#allocation6], 1
    %654 = vsyncpa [#allocation4], 1
    %s655 = scalar_lea.sflag [#allocation4], 1
    %656 = vsyncpa %s655, 1

</llo_original>
